<compile_context>
chip_gen: v7x
topology: tpu7x:2x2x1
jax: 0.10.0
libtpu: 0.0.40
codegen_flags: <defaults>
</compile_context>

<pallas_src>
import math
import functools

import jax
import jax.numpy as jnp
from jax.experimental import pallas as pl
from jax.experimental.pallas import tpu as pltpu


def _layernorm(x, w, b, eps=1e-5):
    # Single-pass: var = E[x^2] - mu^2 (halves the cross-lane reductions).
    mu = jnp.mean(x, axis=-1, keepdims=True)
    ms = jnp.mean(x * x, axis=-1, keepdims=True)
    var = jnp.maximum(ms - mu * mu, 0.0)
    return (x - mu) * jax.lax.rsqrt(var + eps) * w + b


def _gelu_tanh(x):
    # tanh-approximate GELU (tanh goes to the EUP slot).
    c = math.sqrt(2.0 / math.pi)
    return 0.5 * x * (1.0 + jnp.tanh(c * (x + 0.044715 * x * x * x)))


def _mgblock_kernel(n_head,
                    x_ref,
                    ln1w_ref, ln1b_ref,
                    wqkv_ref, bqkv_ref,
                    wproj_ref, bproj_ref,
                    ln2w_ref, ln2b_ref,
                    w1_ref, b1_ref,
                    w2_ref, b2_ref,
                    out_ref,
                    h2_sc, acc_sc):
    f = pl.program_id(1)
    num_ff = pl.num_programs(1)

    T = x_ref.shape[1]
    C = x_ref.shape[2]
    hd = C // n_head
    scale = 1.0 / math.sqrt(hd)

    # ------- attention branch + accumulator init (once per batch row) -------
    @pl.when(f == 0)
    def _attention_and_init():

        def attn_body(q_sc, k_sc, v_sc, ctxh_sc, ctxf_sc):
            x = x_ref[0].astype(jnp.float32)                        # (T, C)
            h1 = _layernorm(x, ln1w_ref[...], ln1b_ref[...]).astype(jnp.bfloat16)

            # Q/K/V: three full-K (K = C) bf16 MXU matmuls against static
            # column slices of wqkv; each f32 result is cast to bf16 right
            # away (no (T, 3C) f32 temporary) and scattered head-major into
            # (H, T, hd) scratch using STATIC lane slices.
            def project(lo, hi, dst, mul=None):
                r = jnp.dot(h1, wqkv_ref[:, lo:hi],
                            preferred_element_type=jnp.float32) + bqkv_ref[:, lo:hi]
                if mul is not None:
                    r = r * mul
                r = r.astype(jnp.bfloat16)
                for i in range(n_head):
                    dst[i] = r[:, i * hd:(i + 1) * hd]

            project(0, C, q_sc, mul=scale)       # fold 1/sqrt(hd) into q
            project(C, 2 * C, k_sc)
            project(2 * C, 3 * C, v_sc)

            # Additive causal mask, built once and reused by every head.
            row = jax.lax.broadcasted_iota(jnp.int32, (T, T), 0)
            col = jax.lax.broadcasted_iota(jnp.int32, (T, T), 1)
            mask_add = jnp.where(col <= row, 0.0, -1e30).astype(jnp.bfloat16)

            # Per-head attention under fori_loop: one (T, T) score tile live
            # at a time (bounded live set, no (H, T, T) tensor).
            def head_body(h, carry):
                q_h = q_sc[h]                                    # (T, hd) bf16
                k_h = k_sc[h]
                v_h = v_sc[h]
                s = jax.lax.dot_general(                         # q_h @ k_h.T
                    q_h, k_h, (((1,), (1,)), ((), ())),
                    preferred_element_type=jnp.float32)          # (T, T) f32
                s = s + mask_add
                m = jnp.max(s, axis=-1, keepdims=True)
                p = jnp.exp(s - m)                               # unnormalized
                denom = jnp.sum(p, axis=-1, keepdims=True)
                ctx = jnp.dot(p.astype(jnp.bfloat16), v_h,
                              preferred_element_type=jnp.float32)  # (T, hd)
                # Deferred softmax normalization (scale ctx, not p).
                ctx = ctx * pl.reciprocal(denom, approx=True)
                ctxh_sc[h] = ctx.astype(jnp.bfloat16)
                return carry

            jax.lax.fori_loop(0, n_head, head_body, 0)

            # Re-pack heads into a lane-dense (T, C) buffer (static slices)
            # and run ONE full-K (K = C) output projection on the MXU.
            for i in range(n_head):
                ctxf_sc[:, i * hd:(i + 1) * hd] = ctxh_sc[i]
            attn = jnp.dot(ctxf_sc[...], wproj_ref[...],
                           preferred_element_type=jnp.float32) + bproj_ref[...]

            x_res = x_ref[0].astype(jnp.float32) + attn          # residual 1
            h2_sc[...] = _layernorm(x_res, ln2w_ref[...],
                                    ln2b_ref[...]).astype(jnp.bfloat16)
            acc_sc[...] = x_res + b2_ref[...]    # second-linear bias added once

        # Attention-only scratch: freed after this branch (VMEM headroom for
        # the feed-forward phase).
        pl.run_scoped(
            attn_body,
            pltpu.VMEM((n_head, T, hd), jnp.bfloat16),   # q   (head-major)
            pltpu.VMEM((n_head, T, hd), jnp.bfloat16),   # k   (head-major)
            pltpu.VMEM((n_head, T, hd), jnp.bfloat16),   # v   (head-major)
            pltpu.VMEM((n_head, T, hd), jnp.bfloat16),   # ctx (head-major)
            pltpu.VMEM((T, C), jnp.bfloat16),            # ctx (flat, for proj)
        )

    # ------- feed-forward chunk over ff_dim (accumulated across grid axis 1) -------
    ff = jnp.dot(h2_sc[...], w1_ref[...],
                 preferred_element_type=jnp.float32) + b1_ref[...]
    ff = _gelu_tanh(ff).astype(jnp.bfloat16)
    acc_sc[...] += jnp.dot(ff, w2_ref[...], preferred_element_type=jnp.float32)

    @pl.when(f == num_ff - 1)
    def _finalize():
        out_ref[0] = acc_sc[...].astype(out_ref.dtype)           # residual 2


def _tpu_vmem_capacity_bytes():
    """Physical VMEM capacity of the local TPU (None if it can't be queried)."""
    try:
        info = pltpu.get_tpu_info()
    except Exception:
        return None
    for name in ("vmem_capacity_bytes", "vmem_size_bytes", "vmem_bytes"):
        cap = getattr(info, name, None)
        if cap:
            return int(cap)
    return None


def _pick_ff_tile(ff_dim, max_tile):
    if ff_dim <= max_tile:
        return ff_dim
    for t in range(max_tile, 0, -128):
        if ff_dim % t == 0:
            return t
    return ff_dim


def mgblock_forward(x, params, n_head, ff_tile=None):
    """x: (B, T, C). params: dict from init_params. Returns (B, T, C)."""
    B, T, C = x.shape
    ff_dim = params["w1"].shape[1]

    # Generation-aware VMEM budget: ~80% of physical VMEM (leaves headroom for
    # the pipeline's double buffers / internal scratch); 48 MiB safe fallback.
    vmem_cap = _tpu_vmem_capacity_bytes()
    if vmem_cap is not None:
        vmem_limit = min(int(vmem_cap * 0.8), 112 * 1024 * 1024)
    else:
        vmem_limit = 48 * 1024 * 1024

    if ff_tile is None:
        max_tile = 2048 if (vmem_cap is not None
                            and vmem_cap >= 100 * 1024 * 1024) else 1024
        ff_tile = _pick_ff_tile(ff_dim, max_tile)
    assert ff_dim % ff_tile == 0
    n_ff = ff_dim // ff_tile

    def const_spec(shape):
        # Block index never changes across the grid -> single-buffer it.
        return pl.BlockSpec(shape, lambda b, f: (0,) * len(shape),
                            pipeline_mode=pl.Buffered(1))

    in_specs = [
        pl.BlockSpec((1, T, C), lambda b, f: (b, 0, 0)),        # x
        const_spec((1, C)), const_spec((1, C)),                 # ln1 w, b
        const_spec((C, 3 * C)), const_spec((1, 3 * C)),         # qkv w, b
        const_spec((C, C)), const_spec((1, C)),                 # proj w, b
        const_spec((1, C)), const_spec((1, C)),                 # ln2 w, b
        pl.BlockSpec((C, ff_tile), lambda b, f: (0, f)),        # w1 chunk
        pl.BlockSpec((1, ff_tile), lambda b, f: (0, f)),        # b1 chunk
        pl.BlockSpec((ff_tile, C), lambda b, f: (f, 0)),        # w2 chunk
        const_spec((1, C)),                                     # b2
    ]
    out_spec = pl.BlockSpec((1, T, C), lambda b, f: (b, 0, 0))

    kernel = functools.partial(_mgblock_kernel, n_head)

    return pl.pallas_call(
        kernel,
        out_shape=jax.ShapeDtypeStruct((B, T, C), x.dtype),
        grid_spec=pltpu.PrefetchScalarGridSpec(
            num_scalar_prefetch=0,
            grid=(B, n_ff),
            in_specs=in_specs,
            out_specs=out_spec,
            scratch_shapes=[
                pltpu.VMEM((T, C), jnp.bfloat16),   # cached ln2(x + attn)
                pltpu.VMEM((T, C), jnp.float32),    # running output accumulator
            ],
        ),
        compiler_params=pltpu.CompilerParams(
            dimension_semantics=("parallel", "arbitrary"),
            vmem_limit_bytes=vmem_limit),
    )(x,
      params["ln1_w"], params["ln1_b"],
      params["wqkv"], params["bqkv"],
      params["wproj"], params["bproj"],
      params["ln2_w"], params["ln2_b"],
      params["w1"], params["b1"],
      params["w2"], params["b2"])


def init_params(key, n_embd, n_head, ff_dim, bias=True):
    assert n_embd % n_head == 0
    ks = jax.random.split(key, 4)
    std = 0.02

    def w(k, shape):
        # Weights stored in bf16 (MXU operand dtype; halves weight VMEM).
        return (std * jax.random.normal(k, shape, jnp.float32)).astype(jnp.bfloat16)

    params = {
        "ln1_w": jnp.ones((1, n_embd), jnp.float32),
        "ln1_b": jnp.zeros((1, n_embd), jnp.float32),
        "ln2_w": jnp.ones((1, n_embd), jnp.float32),
        "ln2_b": jnp.zeros((1, n_embd), jnp.float32),
        # Linear weights stored pre-transposed as (in, out).
        "wqkv": w(ks[0], (n_embd, 3 * n_embd)),
        "bqkv": jnp.zeros((1, 3 * n_embd), jnp.float32),
        "wproj": w(ks[1], (n_embd, n_embd)),
        "bproj": jnp.zeros((1, n_embd), jnp.float32),
        "w1": w(ks[2], (n_embd, ff_dim)),
        "b1": jnp.zeros((1, ff_dim), jnp.float32),
        "w2": w(ks[3], (ff_dim, n_embd)),
        "b2": jnp.zeros((1, n_embd), jnp.float32),
    }
    if not bias:
        for k in ("ln1_b", "ln2_b", "bqkv", "bproj", "b1", "b2"):
            params[k] = jnp.zeros_like(params[k])
    return params


def mgblock_reference(x, params, n_head):
    """Pure-JAX (f32) reference for correctness checking (exact-erf GELU)."""
    B, T, C = x.shape
    hd = C // n_head

    def ln(v, w, b):
        mu = jnp.mean(v, axis=-1, keepdims=True)
        var = jnp.mean((v - mu) ** 2, axis=-1, keepdims=True)
        return (v - mu) / jnp.sqrt(var + 1e-5) * w[0] + b[0]

    h = ln(x, params["ln1_w"], params["ln1_b"])
    qkv = h @ params["wqkv"].astype(jnp.float32) + params["bqkv"][0]
    q, k, v = jnp.split(qkv, 3, axis=-1)
    q = q.reshape(B, T, n_head, hd).transpose(0, 2, 1, 3)
    k = k.reshape(B, T, n_head, hd).transpose(0, 2, 1, 3)
    v = v.reshape(B, T, n_head, hd).transpose(0, 2, 1, 3)
    s = jnp.einsum("bhtd,bhsd->bhts", q, k) / math.sqrt(hd)
    mask = jnp.tril(jnp.ones((T, T), bool))
    s = jnp.where(mask, s, -jnp.inf)
    p = jax.nn.softmax(s, axis=-1)
    a = jnp.einsum("bhts,bhsd->bhtd", p, v).transpose(0, 2, 1, 3).reshape(B, T, C)
    a = a @ params["wproj"].astype(jnp.float32) + params["bproj"][0]
    x = x + a
    h2 = ln(x, params["ln2_w"], params["ln2_b"])
    ff = h2 @ params["w1"].astype(jnp.float32) + params["b1"][0]
    ff = 0.5 * ff * (1.0 + jax.lax.erf(ff / math.sqrt(2.0)))
    ff = ff @ params["w2"].astype(jnp.float32) + params["b2"][0]
    return x + ff


if __name__ == "__main__":
    # Small shapes consistent with the module's forward: (B, T, n_embd).
    # hd = n_embd / n_head = 128 and n_embd = 256 keep lanes / head slices
    # 128-aligned (meaningful layout), while staying tiny.
    B, T = 2, 16
    n_embd, n_head, ff_dim, b_size = 256, 2, 512, 16   # T <= b_size

    key = jax.random.PRNGKey(0)
    kx, kp = jax.random.split(key)
    x = jax.random.normal(kx, (B, T, n_embd), jnp.float32)
    params = init_params(kp, n_embd, n_head, ff_dim, bias=True)

    # ff_tile=256 -> 2 ff chunks, exercising the accumulator grid axis.
    out = mgblock_forward(x, params, n_head, ff_tile=256)
    out = jax.block_until_ready(out)

    ref = mgblock_reference(x, params, n_head)
    assert out.shape == (B, T, n_embd)
    max_err = float(jnp.max(jnp.abs(out - ref)))
    # Tolerance accounts for bf16 MXU operands, approx reciprocal and tanh-GELU.
    assert jnp.allclose(out, ref, atol=2e-2, rtol=2e-2), (
        f"mismatch vs reference (max abs err {max_err})")

    print("KERNEL_OK")
</pallas_src>

<mosaic_0001>
module attributes {stable_mosaic.version = 11 : i64} {
  func.func @_mgblock_kernel(%arg0: i32, %arg1: i32, %arg2: memref<1x16x256xf32, #tpu.memory_space<vmem>>, %arg3: memref<1x256xf32, #tpu.memory_space<vmem>>, %arg4: memref<1x256xf32, #tpu.memory_space<vmem>>, %arg5: memref<256x768xbf16, #tpu.memory_space<vmem>>, %arg6: memref<1x768xf32, #tpu.memory_space<vmem>>, %arg7: memref<256x256xbf16, #tpu.memory_space<vmem>>, %arg8: memref<1x256xf32, #tpu.memory_space<vmem>>, %arg9: memref<1x256xf32, #tpu.memory_space<vmem>>, %arg10: memref<1x256xf32, #tpu.memory_space<vmem>>, %arg11: memref<256x256xbf16, #tpu.memory_space<vmem>>, %arg12: memref<1x256xf32, #tpu.memory_space<vmem>>, %arg13: memref<256x256xbf16, #tpu.memory_space<vmem>>, %arg14: memref<1x256xf32, #tpu.memory_space<vmem>>, %arg15: memref<1x16x256xf32, #tpu.memory_space<vmem>>, %arg16: memref<16x256xbf16, #tpu.memory_space<vmem>>, %arg17: memref<16x256xf32, #tpu.memory_space<vmem>>) attributes {dimension_semantics = [#tpu.dimension_semantics<parallel>, #tpu.dimension_semantics<arbitrary>], iteration_bounds = array<i64: 2, 2>, scalar_prefetch = 0 : i64, scratch_operands = 2 : i64, tpu.core_type = #tpu.core_type<tc>, window_params = [{transform_indices = @transform_0, window_bounds = array<i64: 1, 16, 256>}, {pipeline_mode = #tpu.pipeline_mode<synchronous>, transform_indices = @transform_1, window_bounds = array<i64: 1, 256>}, {pipeline_mode = #tpu.pipeline_mode<synchronous>, transform_indices = @transform_2, window_bounds = array<i64: 1, 256>}, {pipeline_mode = #tpu.pipeline_mode<synchronous>, transform_indices = @transform_3, window_bounds = array<i64: 256, 768>}, {pipeline_mode = #tpu.pipeline_mode<synchronous>, transform_indices = @transform_4, window_bounds = array<i64: 1, 768>}, {pipeline_mode = #tpu.pipeline_mode<synchronous>, transform_indices = @transform_5, window_bounds = array<i64: 256, 256>}, {pipeline_mode = #tpu.pipeline_mode<synchronous>, transform_indices = @transform_6, window_bounds = array<i64: 1, 256>}, {pipeline_mode = #tpu.pipeline_mode<synchronous>, transform_indices = @transform_7, window_bounds = array<i64: 1, 256>}, {pipeline_mode = #tpu.pipeline_mode<synchronous>, transform_indices = @transform_8, window_bounds = array<i64: 1, 256>}, {transform_indices = @transform_9, window_bounds = array<i64: 256, 256>}, {transform_indices = @transform_10, window_bounds = array<i64: 1, 256>}, {transform_indices = @transform_11, window_bounds = array<i64: 256, 256>}, {pipeline_mode = #tpu.pipeline_mode<synchronous>, transform_indices = @transform_12, window_bounds = array<i64: 1, 256>}, {transform_indices = @transform_13, window_bounds = array<i64: 1, 16, 256>}]} {
    %c0_i32 = arith.constant 0 : i32
    %0 = arith.cmpi eq, %arg1, %c0_i32 : i32
    %1 = arith.extui %0 : i1 to i32
    %c0_i32_0 = arith.constant 0 : i32
    %2 = arith.cmpi ne, %1, %c0_i32_0 : i32
    scf.if %2 {
      "tpu.region"() ({
        %alloca = memref.alloca() : memref<2x16x128xbf16, #tpu.memory_space<vmem>>
        %alloca_18 = memref.alloca() : memref<2x16x128xbf16, #tpu.memory_space<vmem>>
        %alloca_19 = memref.alloca() : memref<2x16x128xbf16, #tpu.memory_space<vmem>>
        %alloca_20 = memref.alloca() : memref<2x16x128xbf16, #tpu.memory_space<vmem>>
        %alloca_21 = memref.alloca() : memref<16x256xbf16, #tpu.memory_space<vmem>>
        %c0_22 = arith.constant 0 : index
        %c0_23 = arith.constant 0 : index
        %c0_24 = arith.constant 0 : index
        %31 = vector.load %arg2[%c0_22, %c0_23, %c0_24] : memref<1x16x256xf32, #tpu.memory_space<vmem>>, vector<1x16x256xf32>
        %32 = vector.shape_cast %31 : vector<1x16x256xf32> to vector<16x256xf32>
        %c0_25 = arith.constant 0 : index
        %c0_26 = arith.constant 0 : index
        %33 = vector.load %arg3[%c0_25, %c0_26] : memref<1x256xf32, #tpu.memory_space<vmem>>, vector<1x256xf32>
        %c0_27 = arith.constant 0 : index
        %c0_28 = arith.constant 0 : index
        %34 = vector.load %arg4[%c0_27, %c0_28] : memref<1x256xf32, #tpu.memory_space<vmem>>, vector<1x256xf32>
        %cst_29 = arith.constant dense<0.000000e+00> : vector<16xf32>
        %35 = vector.multi_reduction <add>, %32, %cst_29 [1] : vector<16x256xf32> to vector<16xf32>
        %36 = vector.shape_cast %35 : vector<16xf32> to vector<16x1xf32>
        %cst_30 = arith.constant 2.560000e+02 : f32
        %37 = vector.broadcast %cst_30 : f32 to vector<16x1xf32>
        %38 = arith.divf %36, %37 : vector<16x1xf32>
        %39 = arith.mulf %32, %32 : vector<16x256xf32>
        %cst_31 = arith.constant dense<0.000000e+00> : vector<16xf32>
        %40 = vector.multi_reduction <add>, %39, %cst_31 [1] : vector<16x256xf32> to vector<16xf32>
        %41 = vector.shape_cast %40 : vector<16xf32> to vector<16x1xf32>
        %cst_32 = arith.constant 2.560000e+02 : f32
        %42 = vector.broadcast %cst_32 : f32 to vector<16x1xf32>
        %43 = arith.divf %41, %42 : vector<16x1xf32>
        %44 = arith.mulf %38, %38 : vector<16x1xf32>
        %45 = arith.subf %43, %44 : vector<16x1xf32>
        %cst_33 = arith.constant 0.000000e+00 : f32
        %46 = vector.broadcast %cst_33 : f32 to vector<16x1xf32>
        %47 = arith.maximumf %45, %46 : vector<16x1xf32>
        %48 = vector.broadcast %38 : vector<16x1xf32> to vector<16x256xf32>
        %49 = arith.subf %32, %48 : vector<16x256xf32>
        %cst_34 = arith.constant 9.99999974E-6 : f32
        %50 = vector.broadcast %cst_34 : f32 to vector<16x1xf32>
        %51 = arith.addf %47, %50 : vector<16x1xf32>
        %52 = math.rsqrt %51 : vector<16x1xf32>
        %53 = vector.broadcast %52 : vector<16x1xf32> to vector<16x256xf32>
        %54 = arith.mulf %49, %53 : vector<16x256xf32>
        %55 = vector.broadcast %33 : vector<1x256xf32> to vector<16x256xf32>
        %56 = arith.mulf %54, %55 : vector<16x256xf32>
        %57 = vector.broadcast %34 : vector<1x256xf32> to vector<16x256xf32>
        %58 = arith.addf %56, %57 : vector<16x256xf32>
        %59 = arith.truncf %58 : vector<16x256xf32> to vector<16x256xbf16>
        %c0_35 = arith.constant 0 : index
        %c0_36 = arith.constant 0 : index
        %60 = vector.load %arg5[%c0_35, %c0_36] : memref<256x768xbf16, #tpu.memory_space<vmem>>, vector<256x256xbf16>
        %cst_37 = arith.constant dense<0.000000e+00> : vector<16x256xf32>
        %61 = tpu.matmul %59, %60, %cst_37 {dimension_numbers = #tpu.dot_dimension_numbers<[1], [0], [0], [1], [0, 0, 1, 1], [], []>} : vector<16x256xbf16>, vector<256x256xbf16>, vector<16x256xf32> -> vector<16x256xf32>
        %c0_38 = arith.constant 0 : index
        %c0_39 = arith.constant 0 : index
        %62 = vector.load %arg6[%c0_38, %c0_39] : memref<1x768xf32, #tpu.memory_space<vmem>>, vector<1x256xf32>
        %63 = vector.broadcast %62 : vector<1x256xf32> to vector<16x256xf32>
        %64 = arith.addf %61, %63 : vector<16x256xf32>
        %cst_40 = arith.constant 0.0883883461 : f32
        %65 = vector.broadcast %cst_40 : f32 to vector<16x256xf32>
        %66 = arith.mulf %64, %65 : vector<16x256xf32>
        %67 = arith.truncf %66 : vector<16x256xf32> to vector<16x256xbf16>
        %68 = vector.extract_strided_slice %67 {offsets = [0, 0], sizes = [16, 128], strides = [1, 1]} : vector<16x256xbf16> to vector<16x128xbf16>
        %c0_41 = arith.constant 0 : index
        %c0_42 = arith.constant 0 : index
        %c0_43 = arith.constant 0 : index
        %69 = vector.load %alloca[%c0_41, %c0_42, %c0_43] : memref<2x16x128xbf16, #tpu.memory_space<vmem>>, vector<1x16x128xbf16>
        %70 = vector.shape_cast %69 : vector<1x16x128xbf16> to vector<16x128xbf16>
        %71 = vector.shape_cast %68 : vector<16x128xbf16> to vector<1x16x128xbf16>
        tpu.vector_store %alloca[%c0_41, %c0_42, %c0_43], %71 {strides = array<i32>} : memref<2x16x128xbf16, #tpu.memory_space<vmem>>, vector<1x16x128xbf16>,
        %72 = vector.extract_strided_slice %67 {offsets = [0, 128], sizes = [16, 128], strides = [1, 1]} : vector<16x256xbf16> to vector<16x128xbf16>
        %c1 = arith.constant 1 : index
        %c0_44 = arith.constant 0 : index
        %c0_45 = arith.constant 0 : index
        %73 = vector.load %alloca[%c1, %c0_44, %c0_45] : memref<2x16x128xbf16, #tpu.memory_space<vmem>>, vector<1x16x128xbf16>
        %74 = vector.shape_cast %73 : vector<1x16x128xbf16> to vector<16x128xbf16>
        %75 = vector.shape_cast %72 : vector<16x128xbf16> to vector<1x16x128xbf16>
        tpu.vector_store %alloca[%c1, %c0_44, %c0_45], %75 {strides = array<i32>} : memref<2x16x128xbf16, #tpu.memory_space<vmem>>, vector<1x16x128xbf16>,
        %c0_46 = arith.constant 0 : index
        %c256 = arith.constant 256 : index
        %76 = vector.load %arg5[%c0_46, %c256] : memref<256x768xbf16, #tpu.memory_space<vmem>>, vector<256x256xbf16>
        %cst_47 = arith.constant dense<0.000000e+00> : vector<16x256xf32>
        %77 = tpu.matmul %59, %76, %cst_47 {dimension_numbers = #tpu.dot_dimension_numbers<[1], [0], [0], [1], [0, 0, 1, 1], [], []>} : vector<16x256xbf16>, vector<256x256xbf16>, vector<16x256xf32> -> vector<16x256xf32>
        %c0_48 = arith.constant 0 : index
        %c256_49 = arith.constant 256 : index
        %78 = vector.load %arg6[%c0_48, %c256_49] : memref<1x768xf32, #tpu.memory_space<vmem>>, vector<1x256xf32>
        %79 = vector.broadcast %78 : vector<1x256xf32> to vector<16x256xf32>
        %80 = arith.addf %77, %79 : vector<16x256xf32>
        %81 = arith.truncf %80 : vector<16x256xf32> to vector<16x256xbf16>
        %82 = vector.extract_strided_slice %81 {offsets = [0, 0], sizes = [16, 128], strides = [1, 1]} : vector<16x256xbf16> to vector<16x128xbf16>
        %c0_50 = arith.constant 0 : index
        %c0_51 = arith.constant 0 : index
        %c0_52 = arith.constant 0 : index
        %83 = vector.load %alloca_18[%c0_50, %c0_51, %c0_52] : memref<2x16x128xbf16, #tpu.memory_space<vmem>>, vector<1x16x128xbf16>
        %84 = vector.shape_cast %83 : vector<1x16x128xbf16> to vector<16x128xbf16>
        %85 = vector.shape_cast %82 : vector<16x128xbf16> to vector<1x16x128xbf16>
        tpu.vector_store %alloca_18[%c0_50, %c0_51, %c0_52], %85 {strides = array<i32>} : memref<2x16x128xbf16, #tpu.memory_space<vmem>>, vector<1x16x128xbf16>,
        %86 = vector.extract_strided_slice %81 {offsets = [0, 128], sizes = [16, 128], strides = [1, 1]} : vector<16x256xbf16> to vector<16x128xbf16>
        %c1_53 = arith.constant 1 : index
        %c0_54 = arith.constant 0 : index
        %c0_55 = arith.constant 0 : index
        %87 = vector.load %alloca_18[%c1_53, %c0_54, %c0_55] : memref<2x16x128xbf16, #tpu.memory_space<vmem>>, vector<1x16x128xbf16>
        %88 = vector.shape_cast %87 : vector<1x16x128xbf16> to vector<16x128xbf16>
        %89 = vector.shape_cast %86 : vector<16x128xbf16> to vector<1x16x128xbf16>
        tpu.vector_store %alloca_18[%c1_53, %c0_54, %c0_55], %89 {strides = array<i32>} : memref<2x16x128xbf16, #tpu.memory_space<vmem>>, vector<1x16x128xbf16>,
        %c0_56 = arith.constant 0 : index
        %c512 = arith.constant 512 : index
        %90 = vector.load %arg5[%c0_56, %c512] : memref<256x768xbf16, #tpu.memory_space<vmem>>, vector<256x256xbf16>
        %cst_57 = arith.constant dense<0.000000e+00> : vector<16x256xf32>
        %91 = tpu.matmul %59, %90, %cst_57 {dimension_numbers = #tpu.dot_dimension_numbers<[1], [0], [0], [1], [0, 0, 1, 1], [], []>} : vector<16x256xbf16>, vector<256x256xbf16>, vector<16x256xf32> -> vector<16x256xf32>
        %c0_58 = arith.constant 0 : index
        %c512_59 = arith.constant 512 : index
        %92 = vector.load %arg6[%c0_58, %c512_59] : memref<1x768xf32, #tpu.memory_space<vmem>>, vector<1x256xf32>
        %93 = vector.broadcast %92 : vector<1x256xf32> to vector<16x256xf32>
        %94 = arith.addf %91, %93 : vector<16x256xf32>
        %95 = arith.truncf %94 : vector<16x256xf32> to vector<16x256xbf16>
        %96 = vector.extract_strided_slice %95 {offsets = [0, 0], sizes = [16, 128], strides = [1, 1]} : vector<16x256xbf16> to vector<16x128xbf16>
        %c0_60 = arith.constant 0 : index
        %c0_61 = arith.constant 0 : index
        %c0_62 = arith.constant 0 : index
        %97 = vector.load %alloca_19[%c0_60, %c0_61, %c0_62] : memref<2x16x128xbf16, #tpu.memory_space<vmem>>, vector<1x16x128xbf16>
        %98 = vector.shape_cast %97 : vector<1x16x128xbf16> to vector<16x128xbf16>
        %99 = vector.shape_cast %96 : vector<16x128xbf16> to vector<1x16x128xbf16>
        tpu.vector_store %alloca_19[%c0_60, %c0_61, %c0_62], %99 {strides = array<i32>} : memref<2x16x128xbf16, #tpu.memory_space<vmem>>, vector<1x16x128xbf16>,
        %100 = vector.extract_strided_slice %95 {offsets = [0, 128], sizes = [16, 128], strides = [1, 1]} : vector<16x256xbf16> to vector<16x128xbf16>
        %c1_63 = arith.constant 1 : index
        %c0_64 = arith.constant 0 : index
        %c0_65 = arith.constant 0 : index
        %101 = vector.load %alloca_19[%c1_63, %c0_64, %c0_65] : memref<2x16x128xbf16, #tpu.memory_space<vmem>>, vector<1x16x128xbf16>
        %102 = vector.shape_cast %101 : vector<1x16x128xbf16> to vector<16x128xbf16>
        %103 = vector.shape_cast %100 : vector<16x128xbf16> to vector<1x16x128xbf16>
        tpu.vector_store %alloca_19[%c1_63, %c0_64, %c0_65], %103 {strides = array<i32>} : memref<2x16x128xbf16, #tpu.memory_space<vmem>>, vector<1x16x128xbf16>,
        %104 = tpu.iota {dimensions = array<i32: 0>} : vector<16x16xi32>
        %105 = tpu.iota {dimensions = array<i32: 1>} : vector<16x16xi32>
        %106 = arith.cmpi sle, %105, %104 : vector<16x16xi32>
        %cst_66 = arith.constant 0.000000e+00 : f32
        %cst_67 = arith.constant -1.000000e+30 : f32
        %107 = vector.broadcast %cst_66 : f32 to vector<16x16xf32>
        %108 = vector.broadcast %cst_67 : f32 to vector<16x16xf32>
        %109 = arith.select %106, %107, %108 : vector<16x16xi1>, vector<16x16xf32>
        %110 = arith.truncf %109 : vector<16x16xf32> to vector<16x16xbf16>
        %c0_i32_68 = arith.constant 0 : i32
        %c0_i32_69 = arith.constant 0 : i32
        %c2_i32 = arith.constant 2 : i32
        %111 = arith.addi %c0_i32_69, %c2_i32 : i32
        %c1_i32_70 = arith.constant 1 : i32
        scf.for %arg18 = %c0_i32_69 to %111 step %c1_i32_70  : i32 {
          %159 = arith.index_cast %arg18 : i32 to index
          %c0_107 = arith.constant 0 : index
          %c0_108 = arith.constant 0 : index
          %160 = vector.load %alloca[%159, %c0_107, %c0_108] : memref<2x16x128xbf16, #tpu.memory_space<vmem>>, vector<1x16x128xbf16>
          %161 = vector.shape_cast %160 : vector<1x16x128xbf16> to vector<16x128xbf16>
          %162 = arith.index_cast %arg18 : i32 to index
          %c0_109 = arith.constant 0 : index
          %c0_110 = arith.constant 0 : index
          %163 = vector.load %alloca_18[%162, %c0_109, %c0_110] : memref<2x16x128xbf16, #tpu.memory_space<vmem>>, vector<1x16x128xbf16>
          %164 = vector.shape_cast %163 : vector<1x16x128xbf16> to vector<16x128xbf16>
          %165 = arith.index_cast %arg18 : i32 to index
          %c0_111 = arith.constant 0 : index
          %c0_112 = arith.constant 0 : index
          %166 = vector.load %alloca_19[%165, %c0_111, %c0_112] : memref<2x16x128xbf16, #tpu.memory_space<vmem>>, vector<1x16x128xbf16>
          %167 = vector.shape_cast %166 : vector<1x16x128xbf16> to vector<16x128xbf16>
          %cst_113 = arith.constant dense<0.000000e+00> : vector<16x16xf32>
          %168 = tpu.matmul %161, %164, %cst_113 {dimension_numbers = #tpu.dot_dimension_numbers<[1], [1], [0], [0], [0, 0, 1, 0], [], []>} : vector<16x128xbf16>, vector<16x128xbf16>, vector<16x16xf32> -> vector<16x16xf32>
          %169 = arith.extf %110 : vector<16x16xbf16> to vector<16x16xf32>
          %170 = arith.addf %168, %169 : vector<16x16xf32>
          %cst_114 = arith.constant dense<0xFF800000> : vector<16xf32>
          %171 = vector.multi_reduction <maximumf>, %170, %cst_114 [1] : vector<16x16xf32> to vector<16xf32>
          %172 = vector.shape_cast %171 : vector<16xf32> to vector<16x1xf32>
          %173 = vector.broadcast %172 : vector<16x1xf32> to vector<16x16xf32>
          %174 = arith.subf %170, %173 : vector<16x16xf32>
          %175 = math.exp %174 : vector<16x16xf32>
          %cst_115 = arith.constant dense<0.000000e+00> : vector<16xf32>
          %176 = vector.multi_reduction <add>, %175, %cst_115 [1] : vector<16x16xf32> to vector<16xf32>
          %177 = vector.shape_cast %176 : vector<16xf32> to vector<16x1xf32>
          %178 = arith.truncf %175 : vector<16x16xf32> to vector<16x16xbf16>
          %cst_116 = arith.constant dense<0.000000e+00> : vector<16x128xf32>
          %179 = tpu.matmul %178, %167, %cst_116 {dimension_numbers = #tpu.dot_dimension_numbers<[1], [0], [0], [1], [0, 0, 1, 1], [], []>} : vector<16x16xbf16>, vector<16x128xbf16>, vector<16x128xf32> -> vector<16x128xf32>
          %180 = tpu.reciprocal %177 {approx = true} : vector<16x1xf32> -> vector<16x1xf32>
          %181 = vector.broadcast %180 : vector<16x1xf32> to vector<16x128xf32>
          %182 = arith.mulf %179, %181 : vector<16x128xf32>
          %183 = arith.truncf %182 : vector<16x128xf32> to vector<16x128xbf16>
          %184 = arith.index_cast %arg18 : i32 to index
          %c0_117 = arith.constant 0 : index
          %c0_118 = arith.constant 0 : index
          %185 = vector.load %alloca_20[%184, %c0_117, %c0_118] : memref<2x16x128xbf16, #tpu.memory_space<vmem>>, vector<1x16x128xbf16>
          %186 = vector.shape_cast %185 : vector<1x16x128xbf16> to vector<16x128xbf16>
          %187 = vector.shape_cast %183 : vector<16x128xbf16> to vector<1x16x128xbf16>
          tpu.vector_store %alloca_20[%184, %c0_117, %c0_118], %187 {strides = array<i32>} : memref<2x16x128xbf16, #tpu.memory_space<vmem>>, vector<1x16x128xbf16>,
        }
        %c2_i32_71 = arith.constant 2 : i32
        %c0_72 = arith.constant 0 : index
        %c0_73 = arith.constant 0 : index
        %c0_74 = arith.constant 0 : index
        %112 = vector.load %alloca_20[%c0_72, %c0_73, %c0_74] : memref<2x16x128xbf16, #tpu.memory_space<vmem>>, vector<1x16x128xbf16>
        %113 = vector.shape_cast %112 : vector<1x16x128xbf16> to vector<16x128xbf16>
        %c0_75 = arith.constant 0 : index
        %c0_76 = arith.constant 0 : index
        %114 = vector.load %alloca_21[%c0_75, %c0_76] : memref<16x256xbf16, #tpu.memory_space<vmem>>, vector<16x128xbf16>
        tpu.vector_store %alloca_21[%c0_75, %c0_76], %113 {strides = array<i32>} : memref<16x256xbf16, #tpu.memory_space<vmem>>, vector<16x128xbf16>,
        %c1_77 = arith.constant 1 : index
        %c0_78 = arith.constant 0 : index
        %c0_79 = arith.constant 0 : index
        %115 = vector.load %alloca_20[%c1_77, %c0_78, %c0_79] : memref<2x16x128xbf16, #tpu.memory_space<vmem>>, vector<1x16x128xbf16>
        %116 = vector.shape_cast %115 : vector<1x16x128xbf16> to vector<16x128xbf16>
        %c0_80 = arith.constant 0 : index
        %c128 = arith.constant 128 : index
        %117 = vector.load %alloca_21[%c0_80, %c128] : memref<16x256xbf16, #tpu.memory_space<vmem>>, vector<16x128xbf16>
        tpu.vector_store %alloca_21[%c0_80, %c128], %116 {strides = array<i32>} : memref<16x256xbf16, #tpu.memory_space<vmem>>, vector<16x128xbf16>,
        %c0_81 = arith.constant 0 : index
        %c0_82 = arith.constant 0 : index
        %118 = vector.load %alloca_21[%c0_81, %c0_82] : memref<16x256xbf16, #tpu.memory_space<vmem>>, vector<16x256xbf16>
        %c0_83 = arith.constant 0 : index
        %c0_84 = arith.constant 0 : index
        %119 = vector.load %arg7[%c0_83, %c0_84] : memref<256x256xbf16, #tpu.memory_space<vmem>>, vector<256x256xbf16>
        %cst_85 = arith.constant dense<0.000000e+00> : vector<16x256xf32>
        %120 = tpu.matmul %118, %119, %cst_85 {dimension_numbers = #tpu.dot_dimension_numbers<[1], [0], [0], [1], [0, 0, 1, 1], [], []>} : vector<16x256xbf16>, vector<256x256xbf16>, vector<16x256xf32> -> vector<16x256xf32>
        %c0_86 = arith.constant 0 : index
        %c0_87 = arith.constant 0 : index
        %121 = vector.load %arg8[%c0_86, %c0_87] : memref<1x256xf32, #tpu.memory_space<vmem>>, vector<1x256xf32>
        %122 = vector.broadcast %121 : vector<1x256xf32> to vector<16x256xf32>
        %123 = arith.addf %120, %122 : vector<16x256xf32>
        %c0_88 = arith.constant 0 : index
        %c0_89 = arith.constant 0 : index
        %c0_90 = arith.constant 0 : index
        %124 = vector.load %arg2[%c0_88, %c0_89, %c0_90] : memref<1x16x256xf32, #tpu.memory_space<vmem>>, vector<1x16x256xf32>
        %125 = vector.shape_cast %124 : vector<1x16x256xf32> to vector<16x256xf32>
        %126 = arith.addf %125, %123 : vector<16x256xf32>
        %c0_91 = arith.constant 0 : index
        %c0_92 = arith.constant 0 : index
        %127 = vector.load %arg9[%c0_91, %c0_92] : memref<1x256xf32, #tpu.memory_space<vmem>>, vector<1x256xf32>
        %c0_93 = arith.constant 0 : index
        %c0_94 = arith.constant 0 : index
        %128 = vector.load %arg10[%c0_93, %c0_94] : memref<1x256xf32, #tpu.memory_space<vmem>>, vector<1x256xf32>
        %cst_95 = arith.constant dense<0.000000e+00> : vector<16xf32>
        %129 = vector.multi_reduction <add>, %126, %cst_95 [1] : vector<16x256xf32> to vector<16xf32>
        %130 = vector.shape_cast %129 : vector<16xf32> to vector<16x1xf32>
        %cst_96 = arith.constant 2.560000e+02 : f32
        %131 = vector.broadcast %cst_96 : f32 to vector<16x1xf32>
        %132 = arith.divf %130, %131 : vector<16x1xf32>
        %133 = arith.mulf %126, %126 : vector<16x256xf32>
        %cst_97 = arith.constant dense<0.000000e+00> : vector<16xf32>
        %134 = vector.multi_reduction <add>, %133, %cst_97 [1] : vector<16x256xf32> to vector<16xf32>
        %135 = vector.shape_cast %134 : vector<16xf32> to vector<16x1xf32>
        %cst_98 = arith.constant 2.560000e+02 : f32
        %136 = vector.broadcast %cst_98 : f32 to vector<16x1xf32>
        %137 = arith.divf %135, %136 : vector<16x1xf32>
        %138 = arith.mulf %132, %132 : vector<16x1xf32>
        %139 = arith.subf %137, %138 : vector<16x1xf32>
        %cst_99 = arith.constant 0.000000e+00 : f32
        %140 = vector.broadcast %cst_99 : f32 to vector<16x1xf32>
        %141 = arith.maximumf %139, %140 : vector<16x1xf32>
        %142 = vector.broadcast %132 : vector<16x1xf32> to vector<16x256xf32>
        %143 = arith.subf %126, %142 : vector<16x256xf32>
        %cst_100 = arith.constant 9.99999974E-6 : f32
        %144 = vector.broadcast %cst_100 : f32 to vector<16x1xf32>
        %145 = arith.addf %141, %144 : vector<16x1xf32>
        %146 = math.rsqrt %145 : vector<16x1xf32>
        %147 = vector.broadcast %146 : vector<16x1xf32> to vector<16x256xf32>
        %148 = arith.mulf %143, %147 : vector<16x256xf32>
        %149 = vector.broadcast %127 : vector<1x256xf32> to vector<16x256xf32>
        %150 = arith.mulf %148, %149 : vector<16x256xf32>
        %151 = vector.broadcast %128 : vector<1x256xf32> to vector<16x256xf32>
        %152 = arith.addf %150, %151 : vector<16x256xf32>
        %153 = arith.truncf %152 : vector<16x256xf32> to vector<16x256xbf16>
        %c0_101 = arith.constant 0 : index
        %c0_102 = arith.constant 0 : index
        %154 = vector.load %arg16[%c0_101, %c0_102] : memref<16x256xbf16, #tpu.memory_space<vmem>>, vector<16x256xbf16>
        tpu.vector_store %arg16[%c0_101, %c0_102], %153 {strides = array<i32>} : memref<16x256xbf16, #tpu.memory_space<vmem>>, vector<16x256xbf16>,
        %c0_103 = arith.constant 0 : index
        %c0_104 = arith.constant 0 : index
        %155 = vector.load %arg14[%c0_103, %c0_104] : memref<1x256xf32, #tpu.memory_space<vmem>>, vector<1x256xf32>
        %156 = vector.broadcast %155 : vector<1x256xf32> to vector<16x256xf32>
        %157 = arith.addf %126, %156 : vector<16x256xf32>
        %c0_105 = arith.constant 0 : index
        %c0_106 = arith.constant 0 : index
        %158 = vector.load %arg17[%c0_105, %c0_106] : memref<16x256xf32, #tpu.memory_space<vmem>>, vector<16x256xf32>
        tpu.vector_store %arg17[%c0_105, %c0_106], %157 {strides = array<i32>} : memref<16x256xf32, #tpu.memory_space<vmem>>, vector<16x256xf32>,
        tpu.yield
      }) : () -> ()
    } else {
    }
    %c0 = arith.constant 0 : index
    %c0_1 = arith.constant 0 : index
    %3 = vector.load %arg16[%c0, %c0_1] : memref<16x256xbf16, #tpu.memory_space<vmem>>, vector<16x256xbf16>
    %c0_2 = arith.constant 0 : index
    %c0_3 = arith.constant 0 : index
    %4 = vector.load %arg11[%c0_2, %c0_3] : memref<256x256xbf16, #tpu.memory_space<vmem>>, vector<256x256xbf16>
    %cst = arith.constant dense<0.000000e+00> : vector<16x256xf32>
    %5 = tpu.matmul %3, %4, %cst {dimension_numbers = #tpu.dot_dimension_numbers<[1], [0], [0], [1], [0, 0, 1, 1], [], []>} : vector<16x256xbf16>, vector<256x256xbf16>, vector<16x256xf32> -> vector<16x256xf32>
    %c0_4 = arith.constant 0 : index
    %c0_5 = arith.constant 0 : index
    %6 = vector.load %arg12[%c0_4, %c0_5] : memref<1x256xf32, #tpu.memory_space<vmem>>, vector<1x256xf32>
    %7 = vector.broadcast %6 : vector<1x256xf32> to vector<16x256xf32>
    %8 = arith.addf %5, %7 : vector<16x256xf32>
    %cst_6 = arith.constant 5.000000e-01 : f32
    %9 = vector.broadcast %cst_6 : f32 to vector<16x256xf32>
    %10 = arith.mulf %9, %8 : vector<16x256xf32>
    %cst_7 = arith.constant 4.471500e-02 : f32
    %11 = vector.broadcast %cst_7 : f32 to vector<16x256xf32>
    %12 = arith.mulf %11, %8 : vector<16x256xf32>
    %13 = arith.mulf %12, %8 : vector<16x256xf32>
    %14 = arith.mulf %13, %8 : vector<16x256xf32>
    %15 = arith.addf %8, %14 : vector<16x256xf32>
    %cst_8 = arith.constant 0.797884583 : f32
    %16 = vector.broadcast %cst_8 : f32 to vector<16x256xf32>
    %17 = arith.mulf %16, %15 : vector<16x256xf32>
    %18 = math.tanh %17 : vector<16x256xf32>
    %cst_9 = arith.constant 1.000000e+00 : f32
    %19 = vector.broadcast %cst_9 : f32 to vector<16x256xf32>
    %20 = arith.addf %19, %18 : vector<16x256xf32>
    %21 = arith.mulf %10, %20 : vector<16x256xf32>
    %22 = arith.truncf %21 : vector<16x256xf32> to vector<16x256xbf16>
    %c0_10 = arith.constant 0 : index
    %c0_11 = arith.constant 0 : index
    %23 = vector.load %arg17[%c0_10, %c0_11] : memref<16x256xf32, #tpu.memory_space<vmem>>, vector<16x256xf32>
    %c0_12 = arith.constant 0 : index
    %c0_13 = arith.constant 0 : index
    %24 = vector.load %arg13[%c0_12, %c0_13] : memref<256x256xbf16, #tpu.memory_space<vmem>>, vector<256x256xbf16>
    %cst_14 = arith.constant dense<0.000000e+00> : vector<16x256xf32>
    %25 = tpu.matmul %22, %24, %cst_14 {dimension_numbers = #tpu.dot_dimension_numbers<[1], [0], [0], [1], [0, 0, 1, 1], [], []>} : vector<16x256xbf16>, vector<256x256xbf16>, vector<16x256xf32> -> vector<16x256xf32>
    %26 = arith.addf %23, %25 : vector<16x256xf32>
    %c0_15 = arith.constant 0 : index
    %c0_16 = arith.constant 0 : index
    %27 = vector.load %arg17[%c0_15, %c0_16] : memref<16x256xf32, #tpu.memory_space<vmem>>, vector<16x256xf32>
    tpu.vector_store %arg17[%c0_15, %c0_16], %26 {strides = array<i32>} : memref<16x256xf32, #tpu.memory_space<vmem>>, vector<16x256xf32>,
    %c1_i32 = arith.constant 1 : i32
    %28 = arith.cmpi eq, %arg1, %c1_i32 : i32
    %29 = arith.extui %28 : i1 to i32
    %c0_i32_17 = arith.constant 0 : i32
    %30 = arith.cmpi ne, %29, %c0_i32_17 : i32
    scf.if %30 {
      %c0_18 = arith.constant 0 : index
      %c0_19 = arith.constant 0 : index
      %31 = vector.load %arg17[%c0_18, %c0_19] : memref<16x256xf32, #tpu.memory_space<vmem>>, vector<16x256xf32>
      %c0_20 = arith.constant 0 : index
      %c0_21 = arith.constant 0 : index
      %c0_22 = arith.constant 0 : index
      %32 = vector.load %arg15[%c0_20, %c0_21, %c0_22] : memref<1x16x256xf32, #tpu.memory_space<vmem>>, vector<1x16x256xf32>
      %33 = vector.shape_cast %32 : vector<1x16x256xf32> to vector<16x256xf32>
      %34 = vector.shape_cast %31 : vector<16x256xf32> to vector<1x16x256xf32>
      tpu.vector_store %arg15[%c0_20, %c0_21, %c0_22], %34 {strides = array<i32>} : memref<1x16x256xf32, #tpu.memory_space<vmem>>, vector<1x16x256xf32>,
    } else {
    }
    return
  }
  func.func @transform_0(%arg0: i32, %arg1: i32) -> (i32, i32, i32) {
    %c0_i32 = arith.constant 0 : i32
    %c0_i32_0 = arith.constant 0 : i32
    %c0_i32_1 = arith.constant 0 : i32
    return %arg0, %c0_i32, %c0_i32_0 : i32, i32, i32
  }
  func.func @transform_1(%arg0: i32, %arg1: i32) -> (i32, i32) {
    %c0_i32 = arith.constant 0 : i32
    %c0_i32_0 = arith.constant 0 : i32
    %c0_i32_1 = arith.constant 0 : i32
    return %c0_i32, %c0_i32_0 : i32, i32
  }
  func.func @transform_2(%arg0: i32, %arg1: i32) -> (i32, i32) {
    %c0_i32 = arith.constant 0 : i32
    %c0_i32_0 = arith.constant 0 : i32
    %c0_i32_1 = arith.constant 0 : i32
    return %c0_i32, %c0_i32_0 : i32, i32
  }
  func.func @transform_3(%arg0: i32, %arg1: i32) -> (i32, i32) {
    %c0_i32 = arith.constant 0 : i32
    %c0_i32_0 = arith.constant 0 : i32
    %c0_i32_1 = arith.constant 0 : i32
    return %c0_i32, %c0_i32_0 : i32, i32
  }
  func.func @transform_4(%arg0: i32, %arg1: i32) -> (i32, i32) {
    %c0_i32 = arith.constant 0 : i32
    %c0_i32_0 = arith.constant 0 : i32
    %c0_i32_1 = arith.constant 0 : i32
    return %c0_i32, %c0_i32_0 : i32, i32
  }
  func.func @transform_5(%arg0: i32, %arg1: i32) -> (i32, i32) {
    %c0_i32 = arith.constant 0 : i32
    %c0_i32_0 = arith.constant 0 : i32
    %c0_i32_1 = arith.constant 0 : i32
    return %c0_i32, %c0_i32_0 : i32, i32
  }
  func.func @transform_6(%arg0: i32, %arg1: i32) -> (i32, i32) {
    %c0_i32 = arith.constant 0 : i32
    %c0_i32_0 = arith.constant 0 : i32
    %c0_i32_1 = arith.constant 0 : i32
    return %c0_i32, %c0_i32_0 : i32, i32
  }
  func.func @transform_7(%arg0: i32, %arg1: i32) -> (i32, i32) {
    %c0_i32 = arith.constant 0 : i32
    %c0_i32_0 = arith.constant 0 : i32
    %c0_i32_1 = arith.constant 0 : i32
    return %c0_i32, %c0_i32_0 : i32, i32
  }
  func.func @transform_8(%arg0: i32, %arg1: i32) -> (i32, i32) {
    %c0_i32 = arith.constant 0 : i32
    %c0_i32_0 = arith.constant 0 : i32
    %c0_i32_1 = arith.constant 0 : i32
    return %c0_i32, %c0_i32_0 : i32, i32
  }
  func.func @transform_9(%arg0: i32, %arg1: i32) -> (i32, i32) {
    %c0_i32 = arith.constant 0 : i32
    %c0_i32_0 = arith.constant 0 : i32
    return %c0_i32, %arg1 : i32, i32
  }
  func.func @transform_10(%arg0: i32, %arg1: i32) -> (i32, i32) {
    %c0_i32 = arith.constant 0 : i32
    %c0_i32_0 = arith.constant 0 : i32
    return %c0_i32, %arg1 : i32, i32
  }
  func.func @transform_11(%arg0: i32, %arg1: i32) -> (i32, i32) {
    %c0_i32 = arith.constant 0 : i32
    %c0_i32_0 = arith.constant 0 : i32
    return %arg1, %c0_i32 : i32, i32
  }
  func.func @transform_12(%arg0: i32, %arg1: i32) -> (i32, i32) {
    %c0_i32 = arith.constant 0 : i32
    %c0_i32_0 = arith.constant 0 : i32
    %c0_i32_1 = arith.constant 0 : i32
    return %c0_i32, %c0_i32_0 : i32, i32
  }
  func.func @transform_13(%arg0: i32, %arg1: i32) -> (i32, i32, i32) {
    %c0_i32 = arith.constant 0 : i32
    %c0_i32_0 = arith.constant 0 : i32
    %c0_i32_1 = arith.constant 0 : i32
    return %arg0, %c0_i32, %c0_i32_0 : i32, i32, i32
  }
}

</mosaic_0001>

<llo_original>
// kernel: tpu_custom_call.1
$region0: #{tpu_custom_call.1}
  #allocation0 [shape = 'u32[]', space=smem, size = 0x4, offset = 0x4, fixed_abs, tag = 'smem constant byte address 0x4 - core index']
  #allocation1 [shape = 'u32[144,128]{1,0:T(1,128)}', space=vmem, size = 0x12000, scoped, tag = 'internal scratch']
  #allocation2 [shape = 'bf16[16,256]{1,0:T(16,128)(2,1)}', space=vmem, size = 0x2000, scoped, tag = 'scratch operand']
  #allocation3 [shape = 'f32[16,256]{1,0:T(8,128)}', space=vmem, size = 0x4000, scoped, tag = 'scratch operand']
  %s0 = inlined_call_operand.hbm [shape: f32[2,16,256], index: 0, kind: input, shape index: {}]
  %s1 = inlined_call_operand.hbm [shape: f32[1,256], index: 1, kind: input, shape index: {}]
  %s2 = inlined_call_operand.hbm [shape: f32[1,256], index: 2, kind: input, shape index: {}]
  %s3 = inlined_call_operand.hbm [shape: bf16[256,768], index: 3, kind: input, shape index: {}]
  %s4 = inlined_call_operand.vmem [shape: f32[1,768], index: 4, kind: input, shape index: {}]
  %s5 = inlined_call_operand.hbm [shape: bf16[256,256], index: 5, kind: input, shape index: {}]
  %s6 = inlined_call_operand.vmem [shape: f32[1,256], index: 6, kind: input, shape index: {}]
  %s7 = inlined_call_operand.vmem [shape: f32[1,256], index: 7, kind: input, shape index: {}]
  %s8 = inlined_call_operand.vmem [shape: f32[1,256], index: 8, kind: input, shape index: {}]
  %s9 = inlined_call_operand.hbm [shape: bf16[256,512], index: 9, kind: input, shape index: {}]
  %s10 = inlined_call_operand.vmem [shape: f32[1,512], index: 10, kind: input, shape index: {}]
  %s11 = inlined_call_operand.hbm [shape: bf16[512,256], index: 11, kind: input, shape index: {}]
  %s12 = inlined_call_operand.vmem [shape: f32[1,256], index: 12, kind: input, shape index: {}]
  %s13 = inlined_call_operand.hbm [shape: f32[2,16,256], index: 13, kind: output, shape index: {}]
  %s14 = sld [smem:[#allocation0]]
  $region129: #{tpu_custom_call.1} parent=0
    _
  %s16 = ssub.s32 1, %s14
  %s17 = scalar_select 0, %s16, %s14
  $region1: #{tpu_custom_call.1} parent=0
    #allocation4 [shape = 'u8[32768]{0}', space=vmem, size = 0x8000, scoped, tag = 'input window, operand 0']
    #allocation5 [shape = 's32[2]{0}', space=sflag, size = 0x8, scoped, tag = 'scoped memory for tpu_custom_call.1']
    #allocation6 [shape = 's32[2]{0}', space=sflag, size = 0x8, scoped, tag = 'scoped memory for tpu_custom_call.1']
    #allocation7 [shape = 'u8[1024]{0}', space=vmem, size = 0x400, scoped, tag = 'input window, operand 1, single buffered']
    #allocation8 [shape = 's32[1]{0}', space=sflag, size = 0x4, scoped, tag = 'scoped memory for tpu_custom_call.1']
    #allocation9 [shape = 'u8[1024]{0}', space=vmem, size = 0x400, scoped, tag = 'input window, operand 2, single buffered']
    #allocation10 [shape = 'u8[393216]{0}', space=vmem, size = 0x60000, scoped, tag = 'input window, operand 3, single buffered']
    #allocation11 [shape = 's32[1]{0}', space=sflag, size = 0x4, scoped, tag = 'scoped memory for tpu_custom_call.1']
    #allocation12 [shape = 'u8[131072]{0}', space=vmem, size = 0x20000, scoped, tag = 'input window, operand 5, single buffered']
    #allocation13 [shape = 'u8[262144]{0}', space=vmem, size = 0x40000, scoped, tag = 'input window, operand 9']
    #allocation14 [shape = 's32[2]{0}', space=sflag, size = 0x8, scoped, tag = 'scoped memory for tpu_custom_call.1']
    #allocation15 [shape = 'u8[262144]{0}', space=vmem, size = 0x40000, scoped, tag = 'input window, operand 11']
    #allocation16 [shape = 'u8[32768]{0}', space=vmem, size = 0x8000, scoped, tag = 'output window, operand 0']
    %18 = vsyncpa [#allocation5], 0
    %s19 = scalar_lea.sflag [#allocation5], 1
    %20 = vsyncpa %s19, 0
    %21 = vsyncpa [#allocation8], 0
    %22 = vsyncpa [#allocation11], 0
    %23 = vsyncpa [#allocation14], 0
    %s24 = scalar_lea.sflag [#allocation14], 1
    %25 = vsyncpa %s24, 0
    %26 = vsyncpa [#allocation6], 0
    %s27 = scalar_lea.sflag [#allocation6], 1
    %28 = vsyncpa %s27, 0
    loop: start=0, step=1, limit=6
    $region2: #{tpu_custom_call.1} parent=1 // loop_pre_header
      _
    $region3: #{tpu_custom_call.1} parent=1 // loop_header
      %s30 = sphi 0, %s34
      %p31 = scmp.ge.s32.totalorder %s30, 6
      %s37 = sphi 0, %s49
      %s38 = sphi 0, %s45
      %s39 = sphi 0, %s37
      %s40 = sphi 0, %s38
      %s41 = sphi 0, %s39
      %s42 = sphi 0, %s40
      %s52 = sphi 0, %s54
      %s55 = sphi 0, %s52
      %s56 = sphi 0, %s55
      %s72 = sphi 0, %s56
      %s76 = sphi 0, %s76
      %s78 = sphi 0, %s76
      %s79 = sphi 0, %s78
      %s93 = sphi 0, %s79
      %s97 = sphi 0, %s97
      %s99 = sphi 0, %s97
      %s100 = sphi 0, %s99
      %s114 = sphi 0, %s100
      %s118 = sphi 0, %s118
      %s120 = sphi 0, %s118
      %s121 = sphi 0, %s120
      %s135 = sphi 0, %s121
      %s139 = sphi 0, %s139
      %s141 = sphi 0, %s139
      %s142 = sphi 0, %s141
      %s156 = sphi 0, %s142
      %s160 = sphi 0, %s160
      %s162 = sphi 0, %s160
      %s163 = sphi 0, %s162
      %s177 = sphi 0, %s163
      %s181 = sphi 0, %s181
      %s183 = sphi 0, %s181
      %s184 = sphi 0, %s183
      %s198 = sphi 0, %s184
      %s202 = sphi 0, %s202
      %s204 = sphi 0, %s202
      %s205 = sphi 0, %s204
      %s219 = sphi 0, %s205
      %s223 = sphi 0, %s223
      %s225 = sphi 0, %s223
      %s226 = sphi 0, %s225
      %s240 = sphi 0, %s226
      %s246 = sphi 0, %s248
      %s249 = sphi 0, %s246
      %s250 = sphi 0, %s249
      %s266 = sphi 0, %s250
      %s272 = sphi 0, %s274
      %s275 = sphi 0, %s272
      %s276 = sphi 0, %s275
      %s292 = sphi 0, %s276
      %s298 = sphi 0, %s300
      %s301 = sphi 0, %s298
      %s302 = sphi 0, %s301
      %s318 = sphi 0, %s302
      %s322 = sphi 0, %s322
      %s324 = sphi 0, %s322
      %s325 = sphi 0, %s324
      %s339 = sphi 0, %s325
      %s345 = sphi 0, %s347
      %s348 = sphi 0, %s345
      %s349 = sphi 0, %s348
      %s365 = sphi 0, %s349
    $region4: #{tpu_custom_call.1} parent=1 // loop_header_branch
      %33 = sbr.rel (%p31) target = $region8
    $region5: #{tpu_custom_call.1} parent=1 // loop_body
      %s35 = ssub.s32 %s30, 1
      %s36 = ssub.s32 %s30, 2
      %s43 = sadd.s32 1, %s38
      %p44 = scmp.ge.s32.totalorder %s43, 2
      %s45 = scalar_select %p44, 0, %s43
      %s46 = sadd.s32 1, %s37
      %s47 = scalar_select %p44, %s46, %s37
      %p48 = scmp.ge.s32.totalorder %s47, 2
      %s49 = scalar_select %p48, 0, %s47
      %s50 = ssub.s32 %s37, %s49
      %p51 = scmp.eq.s32.totalorder %s50, 0
      %s53 = sadd.s32 %s52, 1
      %s54 = scalar_select %p51, %s52, %s53
      %p57 = pneg %p51
      %p58 = scmp.eq.s32.totalorder %s30, 3
      %p59 = por %p57, %p58
      %p60 = scmp.ne.s32.totalorder %s52, %s55
      %p61 = scmp.eq.s32.totalorder %s30, 0
      %p62 = por %p60, %p61
      %p63 = scmp.ne.s32.totalorder %s52, %s55
      %p64 = scmp.eq.s32.totalorder %s35, 3
      %p65 = por %p63, %p64
      %p66 = scmp.ne.s32.totalorder %s55, %s56
      %p67 = scmp.eq.s32.totalorder %s35, 0
      %p68 = por %p66, %p67
      %p69 = scmp.ne.s32.totalorder %s55, %s56
      %p70 = scmp.eq.s32.totalorder %s36, 3
      %p71 = por %p69, %p70
      %p73 = scmp.ne.s32.totalorder %s56, %s72
      %p74 = scmp.eq.s32.totalorder %s36, 0
      %p75 = por %p73, %p74
      %s77 = sadd.s32 %s76, 1
      %p80 = scmp.eq.s32.totalorder %s30, 3
      %p81 = scmp.ne.s32.totalorder %s76, %s78
      %p82 = scmp.eq.s32.totalorder %s30, 0
      %p83 = por %p81, %p82
      %p84 = scmp.ne.s32.totalorder %s76, %s78
      %p85 = scmp.eq.s32.totalorder %s35, 3
      %p86 = por %p84, %p85
      %p87 = scmp.ne.s32.totalorder %s78, %s79
      %p88 = scmp.eq.s32.totalorder %s35, 0
      %p89 = por %p87, %p88
      %p90 = scmp.ne.s32.totalorder %s78, %s79
      %p91 = scmp.eq.s32.totalorder %s36, 3
      %p92 = por %p90, %p91
      %p94 = scmp.ne.s32.totalorder %s79, %s93
      %p95 = scmp.eq.s32.totalorder %s36, 0
      %p96 = por %p94, %p95
      %s98 = sadd.s32 %s97, 1
      %p101 = scmp.eq.s32.totalorder %s30, 3
      %p102 = scmp.ne.s32.totalorder %s97, %s99
      %p103 = scmp.eq.s32.totalorder %s30, 0
      %p104 = por %p102, %p103
      %p105 = scmp.ne.s32.totalorder %s97, %s99
      %p106 = scmp.eq.s32.totalorder %s35, 3
      %p107 = por %p105, %p106
      %p108 = scmp.ne.s32.totalorder %s99, %s100
      %p109 = scmp.eq.s32.totalorder %s35, 0
      %p110 = por %p108, %p109
      %p111 = scmp.ne.s32.totalorder %s99, %s100
      %p112 = scmp.eq.s32.totalorder %s36, 3
      %p113 = por %p111, %p112
      %p115 = scmp.ne.s32.totalorder %s100, %s114
      %p116 = scmp.eq.s32.totalorder %s36, 0
      %p117 = por %p115, %p116
      %s119 = sadd.s32 %s118, 1
      %p122 = scmp.eq.s32.totalorder %s30, 3
      %p123 = scmp.ne.s32.totalorder %s118, %s120
      %p124 = scmp.eq.s32.totalorder %s30, 0
      %p125 = por %p123, %p124
      %p126 = scmp.ne.s32.totalorder %s118, %s120
      %p127 = scmp.eq.s32.totalorder %s35, 3
      %p128 = por %p126, %p127
      %p129 = scmp.ne.s32.totalorder %s120, %s121
      %p130 = scmp.eq.s32.totalorder %s35, 0
      %p131 = por %p129, %p130
      %p132 = scmp.ne.s32.totalorder %s120, %s121
      %p133 = scmp.eq.s32.totalorder %s36, 3
      %p134 = por %p132, %p133
      %p136 = scmp.ne.s32.totalorder %s121, %s135
      %p137 = scmp.eq.s32.totalorder %s36, 0
      %p138 = por %p136, %p137
      %s140 = sadd.s32 %s139, 1
      %p143 = scmp.eq.s32.totalorder %s30, 3
      %p144 = scmp.ne.s32.totalorder %s139, %s141
      %p145 = scmp.eq.s32.totalorder %s30, 0
      %p146 = por %p144, %p145
      %p147 = scmp.ne.s32.totalorder %s139, %s141
      %p148 = scmp.eq.s32.totalorder %s35, 3
      %p149 = por %p147, %p148
      %p150 = scmp.ne.s32.totalorder %s141, %s142
      %p151 = scmp.eq.s32.totalorder %s35, 0
      %p152 = por %p150, %p151
      %p153 = scmp.ne.s32.totalorder %s141, %s142
      %p154 = scmp.eq.s32.totalorder %s36, 3
      %p155 = por %p153, %p154
      %p157 = scmp.ne.s32.totalorder %s142, %s156
      %p158 = scmp.eq.s32.totalorder %s36, 0
      %p159 = por %p157, %p158
      %s161 = sadd.s32 %s160, 1
      %p164 = scmp.eq.s32.totalorder %s30, 3
      %p165 = scmp.ne.s32.totalorder %s160, %s162
      %p166 = scmp.eq.s32.totalorder %s30, 0
      %p167 = por %p165, %p166
      %p168 = scmp.ne.s32.totalorder %s160, %s162
      %p169 = scmp.eq.s32.totalorder %s35, 3
      %p170 = por %p168, %p169
      %p171 = scmp.ne.s32.totalorder %s162, %s163
      %p172 = scmp.eq.s32.totalorder %s35, 0
      %p173 = por %p171, %p172
      %p174 = scmp.ne.s32.totalorder %s162, %s163
      %p175 = scmp.eq.s32.totalorder %s36, 3
      %p176 = por %p174, %p175
      %p178 = scmp.ne.s32.totalorder %s163, %s177
      %p179 = scmp.eq.s32.totalorder %s36, 0
      %p180 = por %p178, %p179
      %s182 = sadd.s32 %s181, 1
      %p185 = scmp.eq.s32.totalorder %s30, 3
      %p186 = scmp.ne.s32.totalorder %s181, %s183
      %p187 = scmp.eq.s32.totalorder %s30, 0
      %p188 = por %p186, %p187
      %p189 = scmp.ne.s32.totalorder %s181, %s183
      %p190 = scmp.eq.s32.totalorder %s35, 3
      %p191 = por %p189, %p190
      %p192 = scmp.ne.s32.totalorder %s183, %s184
      %p193 = scmp.eq.s32.totalorder %s35, 0
      %p194 = por %p192, %p193
      %p195 = scmp.ne.s32.totalorder %s183, %s184
      %p196 = scmp.eq.s32.totalorder %s36, 3
      %p197 = por %p195, %p196
      %p199 = scmp.ne.s32.totalorder %s184, %s198
      %p200 = scmp.eq.s32.totalorder %s36, 0
      %p201 = por %p199, %p200
      %s203 = sadd.s32 %s202, 1
      %p206 = scmp.eq.s32.totalorder %s30, 3
      %p207 = scmp.ne.s32.totalorder %s202, %s204
      %p208 = scmp.eq.s32.totalorder %s30, 0
      %p209 = por %p207, %p208
      %p210 = scmp.ne.s32.totalorder %s202, %s204
      %p211 = scmp.eq.s32.totalorder %s35, 3
      %p212 = por %p210, %p211
      %p213 = scmp.ne.s32.totalorder %s204, %s205
      %p214 = scmp.eq.s32.totalorder %s35, 0
      %p215 = por %p213, %p214
      %p216 = scmp.ne.s32.totalorder %s204, %s205
      %p217 = scmp.eq.s32.totalorder %s36, 3
      %p218 = por %p216, %p217
      %p220 = scmp.ne.s32.totalorder %s205, %s219
      %p221 = scmp.eq.s32.totalorder %s36, 0
      %p222 = por %p220, %p221
      %s224 = sadd.s32 %s223, 1
      %p227 = scmp.eq.s32.totalorder %s30, 3
      %p228 = scmp.ne.s32.totalorder %s223, %s225
      %p229 = scmp.eq.s32.totalorder %s30, 0
      %p230 = por %p228, %p229
      %p231 = scmp.ne.s32.totalorder %s223, %s225
      %p232 = scmp.eq.s32.totalorder %s35, 3
      %p233 = por %p231, %p232
      %p234 = scmp.ne.s32.totalorder %s225, %s226
      %p235 = scmp.eq.s32.totalorder %s35, 0
      %p236 = por %p234, %p235
      %p237 = scmp.ne.s32.totalorder %s225, %s226
      %p238 = scmp.eq.s32.totalorder %s36, 3
      %p239 = por %p237, %p238
      %p241 = scmp.ne.s32.totalorder %s226, %s240
      %p242 = scmp.eq.s32.totalorder %s36, 0
      %p243 = por %p241, %p242
      %s244 = ssub.s32 %s38, %s45
      %p245 = scmp.eq.s32.totalorder %s244, 0
      %s247 = sadd.s32 %s246, 1
      %s248 = scalar_select %p245, %s246, %s247
      %p251 = pneg %p245
      %p252 = scmp.eq.s32.totalorder %s30, 3
      %p253 = por %p251, %p252
      %p254 = scmp.ne.s32.totalorder %s246, %s249
      %p255 = scmp.eq.s32.totalorder %s30, 0
      %p256 = por %p254, %p255
      %p257 = scmp.ne.s32.totalorder %s246, %s249
      %p258 = scmp.eq.s32.totalorder %s35, 3
      %p259 = por %p257, %p258
      %p260 = scmp.ne.s32.totalorder %s249, %s250
      %p261 = scmp.eq.s32.totalorder %s35, 0
      %p262 = por %p260, %p261
      %p263 = scmp.ne.s32.totalorder %s249, %s250
      %p264 = scmp.eq.s32.totalorder %s36, 3
      %p265 = por %p263, %p264
      %p267 = scmp.ne.s32.totalorder %s250, %s266
      %p268 = scmp.eq.s32.totalorder %s36, 0
      %p269 = por %p267, %p268
      %s270 = ssub.s32 %s38, %s45
      %p271 = scmp.eq.s32.totalorder %s270, 0
      %s273 = sadd.s32 %s272, 1
      %s274 = scalar_select %p271, %s272, %s273
      %p277 = pneg %p271
      %p278 = scmp.eq.s32.totalorder %s30, 3
      %p279 = por %p277, %p278
      %p280 = scmp.ne.s32.totalorder %s272, %s275
      %p281 = scmp.eq.s32.totalorder %s30, 0
      %p282 = por %p280, %p281
      %p283 = scmp.ne.s32.totalorder %s272, %s275
      %p284 = scmp.eq.s32.totalorder %s35, 3
      %p285 = por %p283, %p284
      %p286 = scmp.ne.s32.totalorder %s275, %s276
      %p287 = scmp.eq.s32.totalorder %s35, 0
      %p288 = por %p286, %p287
      %p289 = scmp.ne.s32.totalorder %s275, %s276
      %p290 = scmp.eq.s32.totalorder %s36, 3
      %p291 = por %p289, %p290
      %p293 = scmp.ne.s32.totalorder %s276, %s292
      %p294 = scmp.eq.s32.totalorder %s36, 0
      %p295 = por %p293, %p294
      %s296 = ssub.s32 %s38, %s45
      %p297 = scmp.eq.s32.totalorder %s296, 0
      %s299 = sadd.s32 %s298, 1
      %s300 = scalar_select %p297, %s298, %s299
      %p303 = pneg %p297
      %p304 = scmp.eq.s32.totalorder %s30, 3
      %p305 = por %p303, %p304
      %p306 = scmp.ne.s32.totalorder %s298, %s301
      %p307 = scmp.eq.s32.totalorder %s30, 0
      %p308 = por %p306, %p307
      %p309 = scmp.ne.s32.totalorder %s298, %s301
      %p310 = scmp.eq.s32.totalorder %s35, 3
      %p311 = por %p309, %p310
      %p312 = scmp.ne.s32.totalorder %s301, %s302
      %p313 = scmp.eq.s32.totalorder %s35, 0
      %p314 = por %p312, %p313
      %p315 = scmp.ne.s32.totalorder %s301, %s302
      %p316 = scmp.eq.s32.totalorder %s36, 3
      %p317 = por %p315, %p316
      %p319 = scmp.ne.s32.totalorder %s302, %s318
      %p320 = scmp.eq.s32.totalorder %s36, 0
      %p321 = por %p319, %p320
      %s323 = sadd.s32 %s322, 1
      %p326 = scmp.eq.s32.totalorder %s30, 3
      %p327 = scmp.ne.s32.totalorder %s322, %s324
      %p328 = scmp.eq.s32.totalorder %s30, 0
      %p329 = por %p327, %p328
      %p330 = scmp.ne.s32.totalorder %s322, %s324
      %p331 = scmp.eq.s32.totalorder %s35, 3
      %p332 = por %p330, %p331
      %p333 = scmp.ne.s32.totalorder %s324, %s325
      %p334 = scmp.eq.s32.totalorder %s35, 0
      %p335 = por %p333, %p334
      %p336 = scmp.ne.s32.totalorder %s324, %s325
      %p337 = scmp.eq.s32.totalorder %s36, 3
      %p338 = por %p336, %p337
      %p340 = scmp.ne.s32.totalorder %s325, %s339
      %p341 = scmp.eq.s32.totalorder %s36, 0
      %p342 = por %p340, %p341
      %s343 = ssub.s32 %s37, %s49
      %p344 = scmp.eq.s32.totalorder %s343, 0
      %s346 = sadd.s32 %s345, 1
      %s347 = scalar_select %p344, %s345, %s346
      %p350 = pneg %p344
      %p351 = scmp.eq.s32.totalorder %s30, 3
      %p352 = por %p350, %p351
      %p353 = scmp.ne.s32.totalorder %s345, %s348
      %p354 = scmp.eq.s32.totalorder %s30, 0
      %p355 = por %p353, %p354
      %p356 = scmp.ne.s32.totalorder %s345, %s348
      %p357 = scmp.eq.s32.totalorder %s35, 3
      %p358 = por %p356, %p357
      %p359 = scmp.ne.s32.totalorder %s348, %s349
      %p360 = scmp.eq.s32.totalorder %s35, 0
      %p361 = por %p359, %p360
      %p362 = scmp.ne.s32.totalorder %s348, %s349
      %p363 = scmp.eq.s32.totalorder %s36, 3
      %p364 = por %p362, %p363
      %p366 = scmp.ne.s32.totalorder %s349, %s365
      %p367 = scmp.eq.s32.totalorder %s36, 0
      %p368 = por %p366, %p367
      %p369 = scmp.le.s32.totalorder 1, %s30
      %p370 = scmp.lt.s32.totalorder %s30, 5
      %p371 = pnand %p369, %p370
      %p372 = pneg %p371
      // Predicated region
      $region9: #{tpu_custom_call.1} parent=5 // pred_check
        _
      $region10: #{tpu_custom_call.1} parent=5 // pred_check_branch
        %374 = sbr.rel (%p371) target = $region12
      $region11: #{tpu_custom_call.1} parent=5 // pred_region
        %s375 = ssub.s32 %s30, 1
        // Predicated region
        $region13: #{tpu_custom_call.1} parent=11 // pred_check
          %p376 = pneg %p89
        $region14: #{tpu_custom_call.1} parent=11 // pred_check_branch
          %378 = sbr.rel (%p376) target = $region16
        $region15: #{tpu_custom_call.1} parent=11 // pred_region
          %s380 = ssub.s32 32, 32
          %381 = vsyncadd [#allocation8], %s380
          %s383 = sshll.u32 [#allocation7], 4
          %s384 = int_to_ptr.vmem [resolvable:$true] %s383
          %386 = dma.hbm_to_vmem [thread:$0]  %s1, 32, %s384, [#allocation8]
        $region16: #{tpu_custom_call.1} parent=11 // pred_fallthru
          _
        // Predicated region
        $region17: #{tpu_custom_call.1} parent=11 // pred_check
          %p387 = pneg %p110
        $region18: #{tpu_custom_call.1} parent=11 // pred_check_branch
          %389 = sbr.rel (%p387) target = $region20
        $region19: #{tpu_custom_call.1} parent=11 // pred_region
          %s391 = ssub.s32 32, 32
          %392 = vsyncadd [#allocation8], %s391
          %s394 = sshll.u32 [#allocation9], 4
          %s395 = int_to_ptr.vmem [resolvable:$true] %s394
          %397 = dma.hbm_to_vmem [thread:$0]  %s2, 32, %s395, [#allocation8]
        $region20: #{tpu_custom_call.1} parent=11 // pred_fallthru
          _
        // Predicated region
        $region21: #{tpu_custom_call.1} parent=11 // pred_check
          %p398 = pneg %p131
        $region22: #{tpu_custom_call.1} parent=11 // pred_check_branch
          %400 = sbr.rel (%p398) target = $region24
        $region23: #{tpu_custom_call.1} parent=11 // pred_region
          %s402 = ssub.s32 12288, 12288
          %403 = vsyncadd [#allocation11], %s402
          %s404 = sshll.u32 [#allocation10], 4
          %s405 = int_to_ptr.vmem [resolvable:$true] %s404
          %410 = dma.hbm_to_vmem [thread:$0]  %s3, 12288, %s405, [#allocation11], 384, 384, 24
        $region24: #{tpu_custom_call.1} parent=11 // pred_fallthru
          _
        // Predicated region
        $region25: #{tpu_custom_call.1} parent=11 // pred_check
          %p411 = pneg %p152
        $region26: #{tpu_custom_call.1} parent=11 // pred_check_branch
          %413 = sbr.rel (%p411) target = $region28
        $region27: #{tpu_custom_call.1} parent=11 // pred_region
          _
        $region28: #{tpu_custom_call.1} parent=11 // pred_fallthru
          _
        // Predicated region
        $region29: #{tpu_custom_call.1} parent=11 // pred_check
          %p414 = pneg %p173
        $region30: #{tpu_custom_call.1} parent=11 // pred_check_branch
          %416 = sbr.rel (%p414) target = $region32
        $region31: #{tpu_custom_call.1} parent=11 // pred_region
          %s418 = ssub.s32 4096, 4096
          %419 = vsyncadd [#allocation11], %s418
          %s420 = sshll.u32 [#allocation12], 4
          %s421 = int_to_ptr.vmem [resolvable:$true] %s420
          %426 = dma.hbm_to_vmem [thread:$0]  %s5, 4096, %s421, [#allocation11], 128, 128, 8
        $region32: #{tpu_custom_call.1} parent=11 // pred_fallthru
          _
        // Predicated region
        $region33: #{tpu_custom_call.1} parent=11 // pred_check
          %p427 = pneg %p194
        $region34: #{tpu_custom_call.1} parent=11 // pred_check_branch
          %429 = sbr.rel (%p427) target = $region36
        $region35: #{tpu_custom_call.1} parent=11 // pred_region
          _
        $region36: #{tpu_custom_call.1} parent=11 // pred_fallthru
          _
        // Predicated region
        $region37: #{tpu_custom_call.1} parent=11 // pred_check
          %p430 = pneg %p215
        $region38: #{tpu_custom_call.1} parent=11 // pred_check_branch
          %432 = sbr.rel (%p430) target = $region40
        $region39: #{tpu_custom_call.1} parent=11 // pred_region
          _
        $region40: #{tpu_custom_call.1} parent=11 // pred_fallthru
          _
        // Predicated region
        $region41: #{tpu_custom_call.1} parent=11 // pred_check
          %p433 = pneg %p236
        $region42: #{tpu_custom_call.1} parent=11 // pred_check_branch
          %435 = sbr.rel (%p433) target = $region44
        $region43: #{tpu_custom_call.1} parent=11 // pred_region
          _
        $region44: #{tpu_custom_call.1} parent=11 // pred_fallthru
          _
        // Predicated region
        $region45: #{tpu_custom_call.1} parent=11 // pred_check
          %p436 = pneg %p335
        $region46: #{tpu_custom_call.1} parent=11 // pred_check_branch
          %438 = sbr.rel (%p436) target = $region48
        $region47: #{tpu_custom_call.1} parent=11 // pred_region
          _
        $region48: #{tpu_custom_call.1} parent=11 // pred_fallthru
          _
      $region12: #{tpu_custom_call.1} parent=5 // pred_fallthru
        _
      %p439 = scmp.lt.s32.totalorder %s30, 4
      // Predicated region
      $region49: #{tpu_custom_call.1} parent=5 // pred_check
        %p440 = pneg %p439
      $region50: #{tpu_custom_call.1} parent=5 // pred_check_branch
        %442 = sbr.rel (%p440) target = $region52
      $region51: #{tpu_custom_call.1} parent=5 // pred_region
        // Predicated region
        $region53: #{tpu_custom_call.1} parent=51 // pred_check
          %p443 = pneg %p62
        $region54: #{tpu_custom_call.1} parent=51 // pred_check_branch
          %445 = sbr.rel (%p443) target = $region56
        $region55: #{tpu_custom_call.1} parent=51 // pred_region
          %s446 = sand.u32 %s52, 1
          %s447 = scalar_lea.sflag [#allocation5], %s446
          %s448 = sand.u32 %s52, 1
          %s449 = smul.addr %s448, 32
          %s450 = scalar_lea.vmem [#allocation4], %s449
          %s452 = ssub.s32 512, 512
          %453 = vsyncadd %s447, %s452
          %s454 = smul.addr %s37, 4
          %s455 = smul.addr %s454, 128
          %s456 = scalar_lea.hbm %s0, %s455
          %s457 = sshll.u32 %s450, 4
          %s458 = int_to_ptr.vmem [resolvable:$true] %s457
          %463 = dma.hbm_to_vmem [thread:$0]  %s456, 512, %s458, %s447, 256, 256, 16
        $region56: #{tpu_custom_call.1} parent=51 // pred_fallthru
          _
        // Predicated region
        $region57: #{tpu_custom_call.1} parent=51 // pred_check
          %p464 = pneg %p256
        $region58: #{tpu_custom_call.1} parent=51 // pred_check_branch
          %466 = sbr.rel (%p464) target = $region60
        $region59: #{tpu_custom_call.1} parent=51 // pred_region
          %s467 = sand.u32 %s30, 1
          %s468 = scalar_lea.sflag [#allocation14], %s467
          %s469 = sand.u32 %s246, 1
          %s470 = smul.addr %s469, 256
          %s471 = scalar_lea.vmem [#allocation13], %s470
          %s472 = smul.u32 2, %s38
          %s474 = ssub.s32 4096, 4096
          %475 = vsyncadd %s468, %s474
          %s476 = smul.addr %s472, 64
          %s477 = scalar_lea.hbm %s9, %s476
          %s478 = sshll.u32 %s471, 4
          %s479 = int_to_ptr.vmem [resolvable:$true] %s478
          %484 = dma.hbm_to_vmem [thread:$0]  %s477, 4096, %s479, %s468, 256, 128, 8
        $region60: #{tpu_custom_call.1} parent=51 // pred_fallthru
          _
        // Predicated region
        $region61: #{tpu_custom_call.1} parent=51 // pred_check
          %p485 = pneg %p282
        $region62: #{tpu_custom_call.1} parent=51 // pred_check_branch
          %487 = sbr.rel (%p485) target = $region64
        $region63: #{tpu_custom_call.1} parent=51 // pred_region
          %s488 = smul.u32 2, %s38
          %p489 = scmp.lt.s32.totalorder %s488, 3
          %s490 = scalar_select %p489, %s488, 3
          %s491 = scalar_lea.vmem %s10, %s490
          %s492 = smul.u32 2, %s38
        $region64: #{tpu_custom_call.1} parent=51 // pred_fallthru
          _
        // Predicated region
        $region65: #{tpu_custom_call.1} parent=51 // pred_check
          %p493 = pneg %p308
        $region66: #{tpu_custom_call.1} parent=51 // pred_check_branch
          %495 = sbr.rel (%p493) target = $region68
        $region67: #{tpu_custom_call.1} parent=51 // pred_region
          %s496 = sand.u32 %s30, 1
          %s497 = scalar_lea.sflag [#allocation14], %s496
          %s498 = sand.u32 %s298, 1
          %s499 = smul.addr %s498, 256
          %s500 = scalar_lea.vmem [#allocation15], %s499
          %s501 = smul.u32 32, %s38
          %s503 = ssub.s32 4096, 4096
          %504 = vsyncadd %s497, %s503
          %s505 = smul.addr %s501, 2
          %s506 = smul.addr %s505, 64
          %s507 = scalar_lea.hbm %s11, %s506
          %s508 = sshll.u32 %s500, 4
          %s509 = int_to_ptr.vmem [resolvable:$true] %s508
          %514 = dma.hbm_to_vmem [thread:$0]  %s507, 4096, %s509, %s497, 128, 128, 8
        $region68: #{tpu_custom_call.1} parent=51 // pred_fallthru
          _
      $region52: #{tpu_custom_call.1} parent=5 // pred_fallthru
        _
      %p515 = scmp.le.s32.totalorder 1, %s30
      %p516 = scmp.lt.s32.totalorder %s30, 5
      %p517 = pnand %p515, %p516
      %p518 = pneg %p517
      // Predicated region
      $region69: #{tpu_custom_call.1} parent=5 // pred_check
        _
      $region70: #{tpu_custom_call.1} parent=5 // pred_check_branch
        %520 = sbr.rel (%p517) target = $region72
      $region71: #{tpu_custom_call.1} parent=5 // pred_region
        %s521 = ssub.s32 %s30, 1
        %s522 = sand.u32 %s55, 1
        %s523 = scalar_lea.sflag [#allocation5], %s522
        %s524 = sand.u32 %s55, 1
        %s525 = smul.addr %s524, 32
        %s526 = scalar_lea.vmem [#allocation4], %s525
        // Predicated region
        $region73: #{tpu_custom_call.1} parent=71 // pred_check
          %p527 = pneg %p68
        $region74: #{tpu_custom_call.1} parent=71 // pred_check_branch
          %529 = sbr.rel (%p527) target = $region76
        $region75: #{tpu_custom_call.1} parent=71 // pred_region
          %530 = dma.done %s523, 512
        $region76: #{tpu_custom_call.1} parent=71 // pred_fallthru
          _
        // Predicated region
        $region77: #{tpu_custom_call.1} parent=71 // pred_check
          %p531 = pneg %p89
        $region78: #{tpu_custom_call.1} parent=71 // pred_check_branch
          %533 = sbr.rel (%p531) target = $region80
        $region79: #{tpu_custom_call.1} parent=71 // pred_region
          %534 = dma.done [#allocation8], 32
        $region80: #{tpu_custom_call.1} parent=71 // pred_fallthru
          _
        // Predicated region
        $region81: #{tpu_custom_call.1} parent=71 // pred_check
          %p535 = pneg %p110
        $region82: #{tpu_custom_call.1} parent=71 // pred_check_branch
          %537 = sbr.rel (%p535) target = $region84
        $region83: #{tpu_custom_call.1} parent=71 // pred_region
          %538 = dma.done [#allocation8], 32
        $region84: #{tpu_custom_call.1} parent=71 // pred_fallthru
          _
        // Predicated region
        $region85: #{tpu_custom_call.1} parent=71 // pred_check
          %p539 = pneg %p131
        $region86: #{tpu_custom_call.1} parent=71 // pred_check_branch
          %541 = sbr.rel (%p539) target = $region88
        $region87: #{tpu_custom_call.1} parent=71 // pred_region
          %542 = dma.done [#allocation11], 12288
        $region88: #{tpu_custom_call.1} parent=71 // pred_fallthru
          _
        // Predicated region
        $region89: #{tpu_custom_call.1} parent=71 // pred_check
          %p543 = pneg %p173
        $region90: #{tpu_custom_call.1} parent=71 // pred_check_branch
          %545 = sbr.rel (%p543) target = $region92
        $region91: #{tpu_custom_call.1} parent=71 // pred_region
          %546 = dma.done [#allocation11], 4096
        $region92: #{tpu_custom_call.1} parent=71 // pred_fallthru
          _
        %s547 = sand.u32 %s35, 1
        %s548 = scalar_lea.sflag [#allocation14], %s547
        %s549 = sand.u32 %s249, 1
        %s550 = smul.addr %s549, 256
        %s551 = scalar_lea.vmem [#allocation13], %s550
        // Predicated region
        $region93: #{tpu_custom_call.1} parent=71 // pred_check
          %p552 = pneg %p262
        $region94: #{tpu_custom_call.1} parent=71 // pred_check_branch
          %554 = sbr.rel (%p552) target = $region96
        $region95: #{tpu_custom_call.1} parent=71 // pred_region
          %555 = dma.done %s548, 4096
        $region96: #{tpu_custom_call.1} parent=71 // pred_fallthru
          _
        %s556 = sand.u32 %s35, 1
        %s557 = scalar_lea.sflag [#allocation14], %s556
        %s558 = sand.u32 %s301, 1
        %s559 = smul.addr %s558, 256
        %s560 = scalar_lea.vmem [#allocation15], %s559
        // Predicated region
        $region97: #{tpu_custom_call.1} parent=71 // pred_check
          %p561 = pneg %p314
        $region98: #{tpu_custom_call.1} parent=71 // pred_check_branch
          %563 = sbr.rel (%p561) target = $region100
        $region99: #{tpu_custom_call.1} parent=71 // pred_region
          %564 = dma.done %s557, 4096
        $region100: #{tpu_custom_call.1} parent=71 // pred_fallthru
          _
        %s565 = sand.u32 %s55, 1
        %s566 = scalar_lea.sflag [#allocation5], %s565
        %s567 = sand.u32 %s55, 1
        %s568 = smul.addr %s567, 32
        %s569 = scalar_lea.vmem [#allocation4], %s568
        %p570 = pneg %p68
        %p571 = pneg %p65
        %p572 = pneg %p89
        %p573 = pneg %p86
        %p574 = pneg %p110
        %p575 = pneg %p107
        %p576 = pneg %p131
        %p577 = pneg %p128
        %p578 = pneg %p152
        %p579 = pneg %p149
        %p580 = pneg %p173
        %p581 = pneg %p170
        %p582 = pneg %p194
        %p583 = pneg %p191
        %p584 = pneg %p215
        %p585 = pneg %p212
        %p586 = pneg %p236
        %p587 = pneg %p233
        %s588 = sand.u32 %s35, 1
        %s589 = scalar_lea.sflag [#allocation14], %s588
        %s590 = sand.u32 %s249, 1
        %s591 = smul.addr %s590, 256
        %s592 = scalar_lea.vmem [#allocation13], %s591
        %p593 = pneg %p262
        %p594 = pneg %p259
        %s595 = smul.u32 2, %s40
        %p596 = scmp.lt.s32.totalorder %s595, 3
        %s597 = scalar_select %p596, %s595, 3
        %s598 = scalar_lea.vmem %s10, %s597
        %p599 = pneg %p288
        %p600 = pneg %p285
        %s601 = sand.u32 %s35, 1
        %s602 = scalar_lea.sflag [#allocation14], %s601
        %s603 = sand.u32 %s301, 1
        %s604 = smul.addr %s603, 256
        %s605 = scalar_lea.vmem [#allocation15], %s604
        %p606 = pneg %p314
        %p607 = pneg %p311
        %p608 = pneg %p335
        %p609 = pneg %p332
        %p610 = pneg %p361
        %p611 = pneg %p358
        %s612 = sand.u32 %s348, 1
        %s613 = scalar_lea.sflag [#allocation6], %s612
        %s614 = sand.u32 %s348, 1
        %s615 = smul.addr %s614, 32
        %s616 = scalar_lea.vmem [#allocation16], %s615
        %s617 = smul.u32 2, %s40
        %s618 = smul.u32 2, %s40
        %p619 = scmp.lt.s32.totalorder %s618, 3
        %s620 = scalar_select %p619, %s618, 3
        %s621 = scalar_lea.vmem %s10, %s620
        %s622 = smul.u32 2, %s40
        %s623 = smul.u32 32, %s40
        %p625 = scmp.eq.s32.totalorder %s40, 0
        // Predicated region
        $region101: #{tpu_custom_call.1} parent=71 // pred_check
          %p626 = pneg %p625
        $region102: #{tpu_custom_call.1} parent=71 // pred_check_branch
          %628 = sbr.rel (%p626) target = $region104
        $region103: #{tpu_custom_call.1} parent=71 // pred_region
          $region105: #{tpu_custom_call.1} parent=103
            #allocation17 [shape = 'u8[8192]{0}', space=vmem, size = 0x2000, scoped, tag = 'scoped memory for tpu_custom_call.1']
            #allocation18 [shape = 'u8[8192]{0}', space=vmem, size = 0x2000, scoped, tag = 'scoped memory for tpu_custom_call.1']
            #allocation19 [shape = 'u8[8192]{0}', space=vmem, size = 0x2000, scoped, tag = 'scoped memory for tpu_custom_call.1']
            #allocation20 [shape = 'u8[8192]{0}', space=vmem, size = 0x2000, scoped, tag = 'scoped memory for tpu_custom_call.1']
            #allocation21 [shape = 'u8[8192]{0}', space=vmem, size = 0x2000, scoped, tag = 'scoped memory for tpu_custom_call.1']
            %v629 = vld [vmem:[%s526] sm:$0xff]
            %v630 = vld [vmem:[%s526 + $0x8] sm:$0xff]
            %v631 = vld [vmem:[%s526 + $0x10] sm:$0xff]
            %v632 = vld [vmem:[%s526 + $0x18] sm:$0xff]
            %v633 = vld [vmem:[#allocation7] sm:$0x3]
            %v634 = vld [vmem:[#allocation9] sm:$0x3]
            %v635 = vadd.f32 %v629, %v630
            %636 = vadd.xlane.f32.xlu0 %v635
            %v637 = vpop.xlane.xlu0 %636
            %v638 = vadd.f32 %v631, %v632
            %639 = vadd.xlane.f32.xlu0 %v638
            %v640 = vpop.xlane.xlu0 %639
            %v641 = vrcp.pop 256.0
            %v642 = vmul.f32 %v637, %v641
            %v643 = vmul.f32 %v640, %v641
            %v644 = vmul.f32 %v629, %v629
            %v645 = vmul.f32 %v630, %v630
            %v646 = vmul.f32 %v631, %v631
            %v647 = vmul.f32 %v632, %v632
            %v648 = vadd.f32 %v644, %v645
            %649 = vadd.xlane.f32.xlu0 %v648
            %v650 = vpop.xlane.xlu0 %649
            %v651 = vadd.f32 %v646, %v647
            %652 = vadd.xlane.f32.xlu0 %v651
            %v653 = vpop.xlane.xlu0 %652
            %v654 = vmul.f32 %v650, %v641
            %v655 = vmul.f32 %v653, %v641
            %v656 = vmul.f32 %v642, %v642
            %v657 = vmul.f32 %v643, %v643
            %v658 = vsub.f32 %v654, %v656
            %v659 = vsub.f32 %v655, %v657
            %v660 = vmax.f32 %v658, 0.0
            %v661 = vmax.f32 %v659, 0.0
            %v662 = vsub.f32 %v629, %v642
            %v663 = vsub.f32 %v630, %v642
            %v664 = vsub.f32 %v631, %v643
            %v665 = vsub.f32 %v632, %v643
            %v666 = vadd.f32 %v660, 1e-05
            %v667 = vadd.f32 %v661, 1e-05
            %v668 = vrsqrt.pop %v666
            %v669 = vrsqrt.pop %v667
            %v670 = vmul.f32 %v662, %v668
            %v671 = vmul.f32 %v663, %v668
            %v672 = vmul.f32 %v664, %v669
            %v673 = vmul.f32 %v665, %v669
            %v675 = vlaneseq
            %v676 = vshrl.u32 %v675, 7
            %v677 = vsub.s32 0, %v676
            %v678 = vrot.slane %v633, %v677
            %v679 = vlaneseq
            %v680 = vshrl.u32 %v679, 7
            %v681 = vsub.s32 1, %v680
            %v682 = vrot.slane %v633, %v681
            %v685 = vmul.f32 %v670, %v678
            %v686 = vmul.f32 %v671, %v682
            %v687 = vmul.f32 %v672, %v678
            %v688 = vmul.f32 %v673, %v682
            %v690 = vlaneseq
            %v691 = vshrl.u32 %v690, 7
            %v692 = vsub.s32 0, %v691
            %v693 = vrot.slane %v634, %v692
            %v694 = vlaneseq
            %v695 = vshrl.u32 %v694, 7
            %v696 = vsub.s32 1, %v695
            %v697 = vrot.slane %v634, %v696
            %v700 = vadd.f32 %v685, %v693
            %v701 = vadd.f32 %v686, %v697
            %v702 = vadd.f32 %v687, %v693
            %v703 = vadd.f32 %v688, %v697
            %v704 = vpack.c.bf16 %v702, %v700
            %v705 = vpack.c.bf16 %v703, %v701
            %v706 = vld [vmem:[#allocation10] sm:$0xff]
            %v707 = vld [vmem:[#allocation10 + $0x18] sm:$0xff]
            %v708 = vld [vmem:[#allocation10 + $0x30] sm:$0xff]
            %v709 = vld [vmem:[#allocation10 + $0x48] sm:$0xff]
            %v710 = vld [vmem:[#allocation10 + $0x60] sm:$0xff]
            %v711 = vld [vmem:[#allocation10 + $0x78] sm:$0xff]
            %v712 = vld [vmem:[#allocation10 + $0x90] sm:$0xff]
            %v713 = vld [vmem:[#allocation10 + $0xa8] sm:$0xff]
            %v714 = vld [vmem:[#allocation10 + $0xc0] sm:$0xff]
            %v715 = vld [vmem:[#allocation10 + $0xd8] sm:$0xff]
            %v716 = vld [vmem:[#allocation10 + $0xf0] sm:$0xff]
            %v717 = vld [vmem:[#allocation10 + $0x108] sm:$0xff]
            %v718 = vld [vmem:[#allocation10 + $0x120] sm:$0xff]
            %v719 = vld [vmem:[#allocation10 + $0x138] sm:$0xff]
            %v720 = vld [vmem:[#allocation10 + $0x150] sm:$0xff]
            %v721 = vld [vmem:[#allocation10 + $0x168] sm:$0xff]
            %v722 = vld [vmem:[#allocation10 + $0x180] sm:$0xff]
            %v723 = vld [vmem:[#allocation10 + $0x198] sm:$0xff]
            %v724 = vld [vmem:[#allocation10 + $0x1b0] sm:$0xff]
            %v725 = vld [vmem:[#allocation10 + $0x1c8] sm:$0xff]
            %v726 = vld [vmem:[#allocation10 + $0x1e0] sm:$0xff]
            %v727 = vld [vmem:[#allocation10 + $0x1f8] sm:$0xff]
            %v728 = vld [vmem:[#allocation10 + $0x210] sm:$0xff]
            %v729 = vld [vmem:[#allocation10 + $0x228] sm:$0xff]
            %v730 = vld [vmem:[#allocation10 + $0x240] sm:$0xff]
            %v731 = vld [vmem:[#allocation10 + $0x258] sm:$0xff]
            %v732 = vld [vmem:[#allocation10 + $0x270] sm:$0xff]
            %v733 = vld [vmem:[#allocation10 + $0x288] sm:$0xff]
            %v734 = vld [vmem:[#allocation10 + $0x2a0] sm:$0xff]
            %v735 = vld [vmem:[#allocation10 + $0x2b8] sm:$0xff]
            %v736 = vld [vmem:[#allocation10 + $0x2d0] sm:$0xff]
            %v737 = vld [vmem:[#allocation10 + $0x2e8] sm:$0xff]
            %v738 = vld [vmem:[%s4] sm:$0x3]
            %v740 = vlaneseq
            %v741 = vshrl.u32 %v740, 7
            %v742 = vsub.s32 0, %v741
            %v743 = vrot.slane %v738, %v742
            %v744 = vlaneseq
            %v745 = vshrl.u32 %v744, 7
            %v746 = vsub.s32 1, %v745
            %v747 = vrot.slane %v738, %v746
            %v782 = vunpack.c.l.b16 %v706
            %v783 = vunpack.c.h.b16 %v706
            %v784 = vunpack.c.l.b16 %v707
            %v785 = vunpack.c.h.b16 %v707
            %v786 = vunpack.c.l.b16 %v708
            %v787 = vunpack.c.h.b16 %v708
            %v788 = vunpack.c.l.b16 %v709
            %v789 = vunpack.c.h.b16 %v709
            %v790 = vunpack.c.l.b16 %v710
            %v791 = vunpack.c.h.b16 %v710
            %v792 = vunpack.c.l.b16 %v711
            %v793 = vunpack.c.h.b16 %v711
            %v794 = vunpack.c.l.b16 %v712
            %v795 = vunpack.c.h.b16 %v712
            %v796 = vunpack.c.l.b16 %v713
            %v797 = vunpack.c.h.b16 %v713
            %v798 = vunpack.c.l.b16 %v714
            %v799 = vunpack.c.h.b16 %v714
            %v800 = vunpack.c.l.b16 %v715
            %v801 = vunpack.c.h.b16 %v715
            %v802 = vunpack.c.l.b16 %v716
            %v803 = vunpack.c.h.b16 %v716
            %v804 = vunpack.c.l.b16 %v717
            %v805 = vunpack.c.h.b16 %v717
            %v806 = vunpack.c.l.b16 %v718
            %v807 = vunpack.c.h.b16 %v718
            %v808 = vunpack.c.l.b16 %v719
            %v809 = vunpack.c.h.b16 %v719
            %v810 = vunpack.c.l.b16 %v720
            %v811 = vunpack.c.h.b16 %v720
            %v812 = vunpack.c.l.b16 %v721
            %v813 = vunpack.c.h.b16 %v721
            %v814 = vunpack.c.l.b16 %v722
            %v815 = vunpack.c.h.b16 %v722
            %v816 = vunpack.c.l.b16 %v723
            %v817 = vunpack.c.h.b16 %v723
            %v818 = vunpack.c.l.b16 %v724
            %v819 = vunpack.c.h.b16 %v724
            %v820 = vunpack.c.l.b16 %v725
            %v821 = vunpack.c.h.b16 %v725
            %v822 = vunpack.c.l.b16 %v726
            %v823 = vunpack.c.h.b16 %v726
            %v824 = vunpack.c.l.b16 %v727
            %v825 = vunpack.c.h.b16 %v727
            %v826 = vunpack.c.l.b16 %v728
            %v827 = vunpack.c.h.b16 %v728
            %v828 = vunpack.c.l.b16 %v729
            %v829 = vunpack.c.h.b16 %v729
            %v830 = vunpack.c.l.b16 %v730
            %v831 = vunpack.c.h.b16 %v730
            %v832 = vunpack.c.l.b16 %v731
            %v833 = vunpack.c.h.b16 %v731
            %v834 = vunpack.c.l.b16 %v732
            %v835 = vunpack.c.h.b16 %v732
            %v836 = vunpack.c.l.b16 %v733
            %v837 = vunpack.c.h.b16 %v733
            %v838 = vunpack.c.l.b16 %v734
            %v839 = vunpack.c.h.b16 %v734
            %v840 = vunpack.c.l.b16 %v735
            %v841 = vunpack.c.h.b16 %v735
            %v842 = vunpack.c.l.b16 %v736
            %v843 = vunpack.c.h.b16 %v736
            %v844 = vunpack.c.l.b16 %v737
            %v845 = vunpack.c.h.b16 %v737
            %v846 = vpack.c.b16 %v784, %v782
            %v847 = vpack.c.b16 %v785, %v783
            %v848 = vpack.c.b16 %v788, %v786
            %v849 = vpack.c.b16 %v789, %v787
            %v850 = vpack.c.b16 %v792, %v790
            %v851 = vpack.c.b16 %v793, %v791
            %v852 = vpack.c.b16 %v796, %v794
            %v853 = vpack.c.b16 %v797, %v795
            %v854 = vpack.c.b16 %v800, %v798
            %v855 = vpack.c.b16 %v801, %v799
            %v856 = vpack.c.b16 %v804, %v802
            %v857 = vpack.c.b16 %v805, %v803
            %v858 = vpack.c.b16 %v808, %v806
            %v859 = vpack.c.b16 %v809, %v807
            %v860 = vpack.c.b16 %v812, %v810
            %v861 = vpack.c.b16 %v813, %v811
            %v862 = vpack.c.b16 %v816, %v814
            %v863 = vpack.c.b16 %v817, %v815
            %v864 = vpack.c.b16 %v820, %v818
            %v865 = vpack.c.b16 %v821, %v819
            %v866 = vpack.c.b16 %v824, %v822
            %v867 = vpack.c.b16 %v825, %v823
            %v868 = vpack.c.b16 %v828, %v826
            %v869 = vpack.c.b16 %v829, %v827
            %v870 = vpack.c.b16 %v832, %v830
            %v871 = vpack.c.b16 %v833, %v831
            %v872 = vpack.c.b16 %v836, %v834
            %v873 = vpack.c.b16 %v837, %v835
            %v874 = vpack.c.b16 %v840, %v838
            %v875 = vpack.c.b16 %v841, %v839
            %v876 = vpack.c.b16 %v844, %v842
            %v877 = vpack.c.b16 %v845, %v843
            %910 = vmatprep.subr.bf16.mxu0 %v847
            %911 = vmatpush1.bf16.msra.mxu0 %v846
            %912 = vmatprep.subr.bf16.mxu0 %v849
            %913 = vmatpush1.bf16.msra.mxu0 %v848
            %914 = vmatprep.subr.bf16.mxu0 %v851
            %915 = vmatpush1.bf16.msra.mxu0 %v850
            %916 = vmatprep.subr.bf16.mxu0 %v853
            %917 = vmatpush1.bf16.msra.mxu0 %v852
            %918 = vmatprep.subr.bf16.mxu0 %v855
            %919 = vmatpush1.bf16.msra.mxu0 %v854
            %920 = vmatprep.subr.bf16.mxu0 %v857
            %921 = vmatpush1.bf16.msra.mxu0 %v856
            %922 = vmatprep.subr.bf16.mxu0 %v859
            %923 = vmatpush1.bf16.msra.mxu0 %v858
            %924 = vmatprep.subr.bf16.mxu0 %v861
            %925 = vmatpush1.bf16.msra.mxu0 %v860
            %926 = vmatprep.subr.bf16.mxu0 %v863
            %927 = vmatpush1.bf16.msra.mxu0 %v862
            %928 = vmatprep.subr.bf16.mxu0 %v865
            %929 = vmatpush1.bf16.msra.mxu0 %v864
            %930 = vmatprep.subr.bf16.mxu0 %v867
            %931 = vmatpush1.bf16.msra.mxu0 %v866
            %932 = vmatprep.subr.bf16.mxu0 %v869
            %933 = vmatpush1.bf16.msra.mxu0 %v868
            %934 = vmatprep.subr.bf16.mxu0 %v871
            %935 = vmatpush1.bf16.msra.mxu0 %v870
            %936 = vmatprep.subr.bf16.mxu0 %v873
            %937 = vmatpush1.bf16.msra.mxu0 %v872
            %938 = vmatprep.subr.bf16.mxu0 %v875
            %939 = vmatpush1.bf16.msra.mxu0 %v874
            %940 = vmatprep.subr.bf16.mxu0 %v877
            %941 = vmatpush1.bf16.msra.mxu0 %v876
            %942 = vmatprep.mubr.bf16.mxu0 %v705
            %943 = vmatmul.mubr.bf16.gmra.mrb[0].mxu0 %v704
            %v944 = vpop.f32.mrb[0].mxu0
            %v945 = vadd.f32 %v743, %v944
            %v946 = vpop.f32.mrb[0].mxu0
            %v947 = vadd.f32 %v747, %v946
            %v948 = vpop.f32.mrb[0].mxu0
            %v949 = vadd.f32 %v743, %v948
            %v950 = vpop.f32.mrb[0].mxu0
            %v951 = vadd.f32 %v747, %v950
            %952 = vdwg.mxu0
            %v953 = vmul.f32 %v945, 0.088388346
            %v954 = vmul.f32 %v947, 0.088388346
            %v955 = vmul.f32 %v949, 0.088388346
            %v956 = vmul.f32 %v951, 0.088388346
            %v957 = vpack.c.bf16 %v955, %v953
            %v958 = vpack.c.bf16 %v956, %v954
            %959 = vst [vmem:[#allocation17] sm:$0xff] %v957
            %s960 = scalar_lea.vmem [#allocation17], 8
            %961 = vst [vmem:[%s960] sm:$0xff] %v958
            %v962 = vld [vmem:[#allocation10 + $0x8] sm:$0xff]
            %v963 = vld [vmem:[#allocation10 + $0x20] sm:$0xff]
            %v964 = vld [vmem:[#allocation10 + $0x38] sm:$0xff]
            %v965 = vld [vmem:[#allocation10 + $0x50] sm:$0xff]
            %v966 = vld [vmem:[#allocation10 + $0x68] sm:$0xff]
            %v967 = vld [vmem:[#allocation10 + $0x80] sm:$0xff]
            %v968 = vld [vmem:[#allocation10 + $0x98] sm:$0xff]
            %v969 = vld [vmem:[#allocation10 + $0xb0] sm:$0xff]
            %v970 = vld [vmem:[#allocation10 + $0xc8] sm:$0xff]
            %v971 = vld [vmem:[#allocation10 + $0xe0] sm:$0xff]
            %v972 = vld [vmem:[#allocation10 + $0xf8] sm:$0xff]
            %v973 = vld [vmem:[#allocation10 + $0x110] sm:$0xff]
            %v974 = vld [vmem:[#allocation10 + $0x128] sm:$0xff]
            %v975 = vld [vmem:[#allocation10 + $0x140] sm:$0xff]
            %v976 = vld [vmem:[#allocation10 + $0x158] sm:$0xff]
            %v977 = vld [vmem:[#allocation10 + $0x170] sm:$0xff]
            %v978 = vld [vmem:[#allocation10 + $0x188] sm:$0xff]
            %v979 = vld [vmem:[#allocation10 + $0x1a0] sm:$0xff]
            %v980 = vld [vmem:[#allocation10 + $0x1b8] sm:$0xff]
            %v981 = vld [vmem:[#allocation10 + $0x1d0] sm:$0xff]
            %v982 = vld [vmem:[#allocation10 + $0x1e8] sm:$0xff]
            %v983 = vld [vmem:[#allocation10 + $0x200] sm:$0xff]
            %v984 = vld [vmem:[#allocation10 + $0x218] sm:$0xff]
            %v985 = vld [vmem:[#allocation10 + $0x230] sm:$0xff]
            %v986 = vld [vmem:[#allocation10 + $0x248] sm:$0xff]
            %v987 = vld [vmem:[#allocation10 + $0x260] sm:$0xff]
            %v988 = vld [vmem:[#allocation10 + $0x278] sm:$0xff]
            %v989 = vld [vmem:[#allocation10 + $0x290] sm:$0xff]
            %v990 = vld [vmem:[#allocation10 + $0x2a8] sm:$0xff]
            %v991 = vld [vmem:[#allocation10 + $0x2c0] sm:$0xff]
            %v992 = vld [vmem:[#allocation10 + $0x2d8] sm:$0xff]
            %v993 = vld [vmem:[#allocation10 + $0x2f0] sm:$0xff]
            %v994 = vld [vmem:[%s4 + $0x2] sm:$0x3]
            %v996 = vlaneseq
            %v997 = vshrl.u32 %v996, 7
            %v998 = vsub.s32 0, %v997
            %v999 = vrot.slane %v994, %v998
            %v1000 = vlaneseq
            %v1001 = vshrl.u32 %v1000, 7
            %v1002 = vsub.s32 1, %v1001
            %v1003 = vrot.slane %v994, %v1002
            %v1038 = vunpack.c.l.b16 %v962
            %v1039 = vunpack.c.h.b16 %v962
            %v1040 = vunpack.c.l.b16 %v963
            %v1041 = vunpack.c.h.b16 %v963
            %v1042 = vunpack.c.l.b16 %v964
            %v1043 = vunpack.c.h.b16 %v964
            %v1044 = vunpack.c.l.b16 %v965
            %v1045 = vunpack.c.h.b16 %v965
            %v1046 = vunpack.c.l.b16 %v966
            %v1047 = vunpack.c.h.b16 %v966
            %v1048 = vunpack.c.l.b16 %v967
            %v1049 = vunpack.c.h.b16 %v967
            %v1050 = vunpack.c.l.b16 %v968
            %v1051 = vunpack.c.h.b16 %v968
            %v1052 = vunpack.c.l.b16 %v969
            %v1053 = vunpack.c.h.b16 %v969
            %v1054 = vunpack.c.l.b16 %v970
            %v1055 = vunpack.c.h.b16 %v970
            %v1056 = vunpack.c.l.b16 %v971
            %v1057 = vunpack.c.h.b16 %v971
            %v1058 = vunpack.c.l.b16 %v972
            %v1059 = vunpack.c.h.b16 %v972
            %v1060 = vunpack.c.l.b16 %v973
            %v1061 = vunpack.c.h.b16 %v973
            %v1062 = vunpack.c.l.b16 %v974
            %v1063 = vunpack.c.h.b16 %v974
            %v1064 = vunpack.c.l.b16 %v975
            %v1065 = vunpack.c.h.b16 %v975
            %v1066 = vunpack.c.l.b16 %v976
            %v1067 = vunpack.c.h.b16 %v976
            %v1068 = vunpack.c.l.b16 %v977
            %v1069 = vunpack.c.h.b16 %v977
            %v1070 = vunpack.c.l.b16 %v978
            %v1071 = vunpack.c.h.b16 %v978
            %v1072 = vunpack.c.l.b16 %v979
            %v1073 = vunpack.c.h.b16 %v979
            %v1074 = vunpack.c.l.b16 %v980
            %v1075 = vunpack.c.h.b16 %v980
            %v1076 = vunpack.c.l.b16 %v981
            %v1077 = vunpack.c.h.b16 %v981
            %v1078 = vunpack.c.l.b16 %v982
            %v1079 = vunpack.c.h.b16 %v982
            %v1080 = vunpack.c.l.b16 %v983
            %v1081 = vunpack.c.h.b16 %v983
            %v1082 = vunpack.c.l.b16 %v984
            %v1083 = vunpack.c.h.b16 %v984
            %v1084 = vunpack.c.l.b16 %v985
            %v1085 = vunpack.c.h.b16 %v985
            %v1086 = vunpack.c.l.b16 %v986
            %v1087 = vunpack.c.h.b16 %v986
            %v1088 = vunpack.c.l.b16 %v987
            %v1089 = vunpack.c.h.b16 %v987
            %v1090 = vunpack.c.l.b16 %v988
            %v1091 = vunpack.c.h.b16 %v988
            %v1092 = vunpack.c.l.b16 %v989
            %v1093 = vunpack.c.h.b16 %v989
            %v1094 = vunpack.c.l.b16 %v990
            %v1095 = vunpack.c.h.b16 %v990
            %v1096 = vunpack.c.l.b16 %v991
            %v1097 = vunpack.c.h.b16 %v991
            %v1098 = vunpack.c.l.b16 %v992
            %v1099 = vunpack.c.h.b16 %v992
            %v1100 = vunpack.c.l.b16 %v993
            %v1101 = vunpack.c.h.b16 %v993
            %v1102 = vpack.c.b16 %v1040, %v1038
            %v1103 = vpack.c.b16 %v1041, %v1039
            %v1104 = vpack.c.b16 %v1044, %v1042
            %v1105 = vpack.c.b16 %v1045, %v1043
            %v1106 = vpack.c.b16 %v1048, %v1046
            %v1107 = vpack.c.b16 %v1049, %v1047
            %v1108 = vpack.c.b16 %v1052, %v1050
            %v1109 = vpack.c.b16 %v1053, %v1051
            %v1110 = vpack.c.b16 %v1056, %v1054
            %v1111 = vpack.c.b16 %v1057, %v1055
            %v1112 = vpack.c.b16 %v1060, %v1058
            %v1113 = vpack.c.b16 %v1061, %v1059
            %v1114 = vpack.c.b16 %v1064, %v1062
            %v1115 = vpack.c.b16 %v1065, %v1063
            %v1116 = vpack.c.b16 %v1068, %v1066
            %v1117 = vpack.c.b16 %v1069, %v1067
            %v1118 = vpack.c.b16 %v1072, %v1070
            %v1119 = vpack.c.b16 %v1073, %v1071
            %v1120 = vpack.c.b16 %v1076, %v1074
            %v1121 = vpack.c.b16 %v1077, %v1075
            %v1122 = vpack.c.b16 %v1080, %v1078
            %v1123 = vpack.c.b16 %v1081, %v1079
            %v1124 = vpack.c.b16 %v1084, %v1082
            %v1125 = vpack.c.b16 %v1085, %v1083
            %v1126 = vpack.c.b16 %v1088, %v1086
            %v1127 = vpack.c.b16 %v1089, %v1087
            %v1128 = vpack.c.b16 %v1092, %v1090
            %v1129 = vpack.c.b16 %v1093, %v1091
            %v1130 = vpack.c.b16 %v1096, %v1094
            %v1131 = vpack.c.b16 %v1097, %v1095
            %v1132 = vpack.c.b16 %v1100, %v1098
            %v1133 = vpack.c.b16 %v1101, %v1099
            %1166 = vmatprep.subr.bf16.mxu0 %v1103
            %1167 = vmatpush1.bf16.msra.mxu0 %v1102
            %1168 = vmatprep.subr.bf16.mxu0 %v1105
            %1169 = vmatpush1.bf16.msra.mxu0 %v1104
            %1170 = vmatprep.subr.bf16.mxu0 %v1107
            %1171 = vmatpush1.bf16.msra.mxu0 %v1106
            %1172 = vmatprep.subr.bf16.mxu0 %v1109
            %1173 = vmatpush1.bf16.msra.mxu0 %v1108
            %1174 = vmatprep.subr.bf16.mxu0 %v1111
            %1175 = vmatpush1.bf16.msra.mxu0 %v1110
            %1176 = vmatprep.subr.bf16.mxu0 %v1113
            %1177 = vmatpush1.bf16.msra.mxu0 %v1112
            %1178 = vmatprep.subr.bf16.mxu0 %v1115
            %1179 = vmatpush1.bf16.msra.mxu0 %v1114
            %1180 = vmatprep.subr.bf16.mxu0 %v1117
            %1181 = vmatpush1.bf16.msra.mxu0 %v1116
            %1182 = vmatprep.subr.bf16.mxu0 %v1119
            %1183 = vmatpush1.bf16.msra.mxu0 %v1118
            %1184 = vmatprep.subr.bf16.mxu0 %v1121
            %1185 = vmatpush1.bf16.msra.mxu0 %v1120
            %1186 = vmatprep.subr.bf16.mxu0 %v1123
            %1187 = vmatpush1.bf16.msra.mxu0 %v1122
            %1188 = vmatprep.subr.bf16.mxu0 %v1125
            %1189 = vmatpush1.bf16.msra.mxu0 %v1124
            %1190 = vmatprep.subr.bf16.mxu0 %v1127
            %1191 = vmatpush1.bf16.msra.mxu0 %v1126
            %1192 = vmatprep.subr.bf16.mxu0 %v1129
            %1193 = vmatpush1.bf16.msra.mxu0 %v1128
            %1194 = vmatprep.subr.bf16.mxu0 %v1131
            %1195 = vmatpush1.bf16.msra.mxu0 %v1130
            %1196 = vmatprep.subr.bf16.mxu0 %v1133
            %1197 = vmatpush1.bf16.msra.mxu0 %v1132
            %1198 = vmatprep.mubr.bf16.mxu0 %v705
            %1199 = vmatmul.mubr.bf16.gmra.mrb[0].mxu0 %v704
            %v1200 = vpop.f32.mrb[0].mxu0
            %v1201 = vadd.f32 %v999, %v1200
            %v1202 = vpop.f32.mrb[0].mxu0
            %v1203 = vadd.f32 %v1003, %v1202
            %v1204 = vpop.f32.mrb[0].mxu0
            %v1205 = vadd.f32 %v999, %v1204
            %v1206 = vpop.f32.mrb[0].mxu0
            %v1207 = vadd.f32 %v1003, %v1206
            %1208 = vdwg.mxu0
            %v1209 = vpack.c.bf16 %v1205, %v1201
            %v1210 = vpack.c.bf16 %v1207, %v1203
            %1211 = vst [vmem:[#allocation18] sm:$0xff] %v1209
            %s1212 = scalar_lea.vmem [#allocation18], 8
            %1213 = vst [vmem:[%s1212] sm:$0xff] %v1210
            %v1214 = vld [vmem:[#allocation10 + $0x10] sm:$0xff]
            %v1215 = vld [vmem:[#allocation10 + $0x28] sm:$0xff]
            %v1216 = vld [vmem:[#allocation10 + $0x40] sm:$0xff]
            %v1217 = vld [vmem:[#allocation10 + $0x58] sm:$0xff]
            %v1218 = vld [vmem:[#allocation10 + $0x70] sm:$0xff]
            %v1219 = vld [vmem:[#allocation10 + $0x88] sm:$0xff]
            %v1220 = vld [vmem:[#allocation10 + $0xa0] sm:$0xff]
            %v1221 = vld [vmem:[#allocation10 + $0xb8] sm:$0xff]
            %v1222 = vld [vmem:[#allocation10 + $0xd0] sm:$0xff]
            %v1223 = vld [vmem:[#allocation10 + $0xe8] sm:$0xff]
            %v1224 = vld [vmem:[#allocation10 + $0x100] sm:$0xff]
            %v1225 = vld [vmem:[#allocation10 + $0x118] sm:$0xff]
            %v1226 = vld [vmem:[#allocation10 + $0x130] sm:$0xff]
            %v1227 = vld [vmem:[#allocation10 + $0x148] sm:$0xff]
            %v1228 = vld [vmem:[#allocation10 + $0x160] sm:$0xff]
            %v1229 = vld [vmem:[#allocation10 + $0x178] sm:$0xff]
            %v1230 = vld [vmem:[#allocation10 + $0x190] sm:$0xff]
            %v1231 = vld [vmem:[#allocation10 + $0x1a8] sm:$0xff]
            %v1232 = vld [vmem:[#allocation10 + $0x1c0] sm:$0xff]
            %v1233 = vld [vmem:[#allocation10 + $0x1d8] sm:$0xff]
            %v1234 = vld [vmem:[#allocation10 + $0x1f0] sm:$0xff]
            %v1235 = vld [vmem:[#allocation10 + $0x208] sm:$0xff]
            %v1236 = vld [vmem:[#allocation10 + $0x220] sm:$0xff]
            %v1237 = vld [vmem:[#allocation10 + $0x238] sm:$0xff]
            %v1238 = vld [vmem:[#allocation10 + $0x250] sm:$0xff]
            %v1239 = vld [vmem:[#allocation10 + $0x268] sm:$0xff]
            %v1240 = vld [vmem:[#allocation10 + $0x280] sm:$0xff]
            %v1241 = vld [vmem:[#allocation10 + $0x298] sm:$0xff]
            %v1242 = vld [vmem:[#allocation10 + $0x2b0] sm:$0xff]
            %v1243 = vld [vmem:[#allocation10 + $0x2c8] sm:$0xff]
            %v1244 = vld [vmem:[#allocation10 + $0x2e0] sm:$0xff]
            %v1245 = vld [vmem:[#allocation10 + $0x2f8] sm:$0xff]
            %v1246 = vld [vmem:[%s4 + $0x4] sm:$0x3]
            %v1248 = vlaneseq
            %v1249 = vshrl.u32 %v1248, 7
            %v1250 = vsub.s32 0, %v1249
            %v1251 = vrot.slane %v1246, %v1250
            %v1252 = vlaneseq
            %v1253 = vshrl.u32 %v1252, 7
            %v1254 = vsub.s32 1, %v1253
            %v1255 = vrot.slane %v1246, %v1254
            %v1290 = vunpack.c.l.b16 %v1214
            %v1291 = vunpack.c.h.b16 %v1214
            %v1292 = vunpack.c.l.b16 %v1215
            %v1293 = vunpack.c.h.b16 %v1215
            %v1294 = vunpack.c.l.b16 %v1216
            %v1295 = vunpack.c.h.b16 %v1216
            %v1296 = vunpack.c.l.b16 %v1217
            %v1297 = vunpack.c.h.b16 %v1217
            %v1298 = vunpack.c.l.b16 %v1218
            %v1299 = vunpack.c.h.b16 %v1218
            %v1300 = vunpack.c.l.b16 %v1219
            %v1301 = vunpack.c.h.b16 %v1219
            %v1302 = vunpack.c.l.b16 %v1220
            %v1303 = vunpack.c.h.b16 %v1220
            %v1304 = vunpack.c.l.b16 %v1221
            %v1305 = vunpack.c.h.b16 %v1221
            %v1306 = vunpack.c.l.b16 %v1222
            %v1307 = vunpack.c.h.b16 %v1222
            %v1308 = vunpack.c.l.b16 %v1223
            %v1309 = vunpack.c.h.b16 %v1223
            %v1310 = vunpack.c.l.b16 %v1224
            %v1311 = vunpack.c.h.b16 %v1224
            %v1312 = vunpack.c.l.b16 %v1225
            %v1313 = vunpack.c.h.b16 %v1225
            %v1314 = vunpack.c.l.b16 %v1226
            %v1315 = vunpack.c.h.b16 %v1226
            %v1316 = vunpack.c.l.b16 %v1227
            %v1317 = vunpack.c.h.b16 %v1227
            %v1318 = vunpack.c.l.b16 %v1228
            %v1319 = vunpack.c.h.b16 %v1228
            %v1320 = vunpack.c.l.b16 %v1229
            %v1321 = vunpack.c.h.b16 %v1229
            %v1322 = vunpack.c.l.b16 %v1230
            %v1323 = vunpack.c.h.b16 %v1230
            %v1324 = vunpack.c.l.b16 %v1231
            %v1325 = vunpack.c.h.b16 %v1231
            %v1326 = vunpack.c.l.b16 %v1232
            %v1327 = vunpack.c.h.b16 %v1232
            %v1328 = vunpack.c.l.b16 %v1233
            %v1329 = vunpack.c.h.b16 %v1233
            %v1330 = vunpack.c.l.b16 %v1234
            %v1331 = vunpack.c.h.b16 %v1234
            %v1332 = vunpack.c.l.b16 %v1235
            %v1333 = vunpack.c.h.b16 %v1235
            %v1334 = vunpack.c.l.b16 %v1236
            %v1335 = vunpack.c.h.b16 %v1236
            %v1336 = vunpack.c.l.b16 %v1237
            %v1337 = vunpack.c.h.b16 %v1237
            %v1338 = vunpack.c.l.b16 %v1238
            %v1339 = vunpack.c.h.b16 %v1238
            %v1340 = vunpack.c.l.b16 %v1239
            %v1341 = vunpack.c.h.b16 %v1239
            %v1342 = vunpack.c.l.b16 %v1240
            %v1343 = vunpack.c.h.b16 %v1240
            %v1344 = vunpack.c.l.b16 %v1241
            %v1345 = vunpack.c.h.b16 %v1241
            %v1346 = vunpack.c.l.b16 %v1242
            %v1347 = vunpack.c.h.b16 %v1242
            %v1348 = vunpack.c.l.b16 %v1243
            %v1349 = vunpack.c.h.b16 %v1243
            %v1350 = vunpack.c.l.b16 %v1244
            %v1351 = vunpack.c.h.b16 %v1244
            %v1352 = vunpack.c.l.b16 %v1245
            %v1353 = vunpack.c.h.b16 %v1245
            %v1354 = vpack.c.b16 %v1292, %v1290
            %v1355 = vpack.c.b16 %v1293, %v1291
            %v1356 = vpack.c.b16 %v1296, %v1294
            %v1357 = vpack.c.b16 %v1297, %v1295
            %v1358 = vpack.c.b16 %v1300, %v1298
            %v1359 = vpack.c.b16 %v1301, %v1299
            %v1360 = vpack.c.b16 %v1304, %v1302
            %v1361 = vpack.c.b16 %v1305, %v1303
            %v1362 = vpack.c.b16 %v1308, %v1306
            %v1363 = vpack.c.b16 %v1309, %v1307
            %v1364 = vpack.c.b16 %v1312, %v1310
            %v1365 = vpack.c.b16 %v1313, %v1311
            %v1366 = vpack.c.b16 %v1316, %v1314
            %v1367 = vpack.c.b16 %v1317, %v1315
            %v1368 = vpack.c.b16 %v1320, %v1318
            %v1369 = vpack.c.b16 %v1321, %v1319
            %v1370 = vpack.c.b16 %v1324, %v1322
            %v1371 = vpack.c.b16 %v1325, %v1323
            %v1372 = vpack.c.b16 %v1328, %v1326
            %v1373 = vpack.c.b16 %v1329, %v1327
            %v1374 = vpack.c.b16 %v1332, %v1330
            %v1375 = vpack.c.b16 %v1333, %v1331
            %v1376 = vpack.c.b16 %v1336, %v1334
            %v1377 = vpack.c.b16 %v1337, %v1335
            %v1378 = vpack.c.b16 %v1340, %v1338
            %v1379 = vpack.c.b16 %v1341, %v1339
            %v1380 = vpack.c.b16 %v1344, %v1342
            %v1381 = vpack.c.b16 %v1345, %v1343
            %v1382 = vpack.c.b16 %v1348, %v1346
            %v1383 = vpack.c.b16 %v1349, %v1347
            %v1384 = vpack.c.b16 %v1352, %v1350
            %v1385 = vpack.c.b16 %v1353, %v1351
            %1418 = vmatprep.subr.bf16.mxu0 %v1355
            %1419 = vmatpush1.bf16.msra.mxu0 %v1354
            %1420 = vmatprep.subr.bf16.mxu0 %v1357
            %1421 = vmatpush1.bf16.msra.mxu0 %v1356
            %1422 = vmatprep.subr.bf16.mxu0 %v1359
            %1423 = vmatpush1.bf16.msra.mxu0 %v1358
            %1424 = vmatprep.subr.bf16.mxu0 %v1361
            %1425 = vmatpush1.bf16.msra.mxu0 %v1360
            %1426 = vmatprep.subr.bf16.mxu0 %v1363
            %1427 = vmatpush1.bf16.msra.mxu0 %v1362
            %1428 = vmatprep.subr.bf16.mxu0 %v1365
            %1429 = vmatpush1.bf16.msra.mxu0 %v1364
            %1430 = vmatprep.subr.bf16.mxu0 %v1367
            %1431 = vmatpush1.bf16.msra.mxu0 %v1366
            %1432 = vmatprep.subr.bf16.mxu0 %v1369
            %1433 = vmatpush1.bf16.msra.mxu0 %v1368
            %1434 = vmatprep.subr.bf16.mxu0 %v1371
            %1435 = vmatpush1.bf16.msra.mxu0 %v1370
            %1436 = vmatprep.subr.bf16.mxu0 %v1373
            %1437 = vmatpush1.bf16.msra.mxu0 %v1372
            %1438 = vmatprep.subr.bf16.mxu0 %v1375
            %1439 = vmatpush1.bf16.msra.mxu0 %v1374
            %1440 = vmatprep.subr.bf16.mxu0 %v1377
            %1441 = vmatpush1.bf16.msra.mxu0 %v1376
            %1442 = vmatprep.subr.bf16.mxu0 %v1379
            %1443 = vmatpush1.bf16.msra.mxu0 %v1378
            %1444 = vmatprep.subr.bf16.mxu0 %v1381
            %1445 = vmatpush1.bf16.msra.mxu0 %v1380
            %1446 = vmatprep.subr.bf16.mxu0 %v1383
            %1447 = vmatpush1.bf16.msra.mxu0 %v1382
            %1448 = vmatprep.subr.bf16.mxu0 %v1385
            %1449 = vmatpush1.bf16.msra.mxu0 %v1384
            %1450 = vmatprep.mubr.bf16.mxu0 %v705
            %1451 = vmatmul.mubr.bf16.gmra.mrb[0].mxu0 %v704
            %v1452 = vpop.f32.mrb[0].mxu0
            %v1453 = vadd.f32 %v1251, %v1452
            %v1454 = vpop.f32.mrb[0].mxu0
            %v1455 = vadd.f32 %v1255, %v1454
            %v1456 = vpop.f32.mrb[0].mxu0
            %v1457 = vadd.f32 %v1251, %v1456
            %v1458 = vpop.f32.mrb[0].mxu0
            %v1459 = vadd.f32 %v1255, %v1458
            %1460 = vdwg.mxu0
            %v1461 = vpack.c.bf16 %v1457, %v1453
            %v1462 = vpack.c.bf16 %v1459, %v1455
            %1463 = vst [vmem:[#allocation19] sm:$0xff] %v1461
            %s1464 = scalar_lea.vmem [#allocation19], 8
            %1465 = vst [vmem:[%s1464] sm:$0xff] %v1462
            %v1466 = vlaneseq
            %v1467 = vshrl.u32 %v1466, 7
            %v1468 = vadd.s32 %v1467, 8
            %v1469 = vlaneseq
            %v1470 = vand.u32 %v1469, 127
            %vm1471 = vcmp.le.s32.totalorder %v1470, %v1467
            %vm1472 = vcmp.le.s32.totalorder %v1470, %v1468
            %v1473 = vsel %vm1471, 0.0, -1e+30
            %v1474 = vsel %vm1472, 0.0, -1e+30
            %v1475 = vpack.c.bf16 %v1474, %v1473
            loop: start=0, step=1, limit=2
            $region106: #{tpu_custom_call.1} parent=105 // loop_pre_header
              _
            $region107: #{tpu_custom_call.1} parent=105 // loop_header
              %s1477 = sphi 0, %s1481
              %p1478 = scmp.ge.s32.totalorder %s1477, 2
            $region108: #{tpu_custom_call.1} parent=105 // loop_header_branch
              %1480 = sbr.rel (%p1478) target = $region112
            $region109: #{tpu_custom_call.1} parent=105 // loop_body
              %s1482 = smul.addr %s1477, 8
              %s1483 = scalar_lea.vmem [#allocation17], %s1482
              %v1484 = vld [vmem:[%s1483] sm:$0xff]
              %s1485 = smul.addr %s1477, 8
              %s1486 = scalar_lea.vmem [#allocation18], %s1485
              %v1487 = vld [vmem:[%s1486] sm:$0xff]
              %s1488 = smul.addr %s1477, 8
              %s1489 = scalar_lea.vmem [#allocation19], %s1488
              %v1490 = vld [vmem:[%s1489] sm:$0xff]
              %v1491 = vunpack.c.l.bf16 %v1475
              %v1492 = vunpack.c.h.bf16 %v1475
              %1493 = vmatprep.subr.bf16.mxu0 0
              %1494 = vmatpush1.bf16.xpose.msra.mxu0 %v1487
              %1495 = vmatprep.subr.bf16.mxu0 0
              %1496 = vmatpush1.bf16.xpose.msra.mxu0 0
              %1497 = vmatprep.subr.bf16.mxu0 0
              %1498 = vmatpush1.bf16.xpose.msra.mxu0 0
              %1499 = vmatprep.subr.bf16.mxu0 0
              %1500 = vmatpush1.bf16.xpose.msra.mxu0 0
              %1501 = vmatprep.subr.bf16.mxu0 0
              %1502 = vmatpush1.bf16.xpose.msra.mxu0 0
              %1503 = vmatprep.subr.bf16.mxu0 0
              %1504 = vmatpush1.bf16.xpose.msra.mxu0 0
              %1505 = vmatprep.subr.bf16.mxu0 0
              %1506 = vmatpush1.bf16.xpose.msra.mxu0 0
              %1507 = vmatprep.subr.bf16.mxu0 0
              %1508 = vmatpush1.bf16.xpose.msra.mxu0 0
              %1509 = vmatprep.subr.bf16.mxu0 0
              %1510 = vmatpush1.bf16.xpose.msra.mxu0 0
              %1511 = vmatprep.subr.bf16.mxu0 0
              %1512 = vmatpush1.bf16.xpose.msra.mxu0 0
              %1513 = vmatprep.subr.bf16.mxu0 0
              %1514 = vmatpush1.bf16.xpose.msra.mxu0 0
              %1515 = vmatprep.subr.bf16.mxu0 0
              %1516 = vmatpush1.bf16.xpose.msra.mxu0 0
              %1517 = vmatprep.subr.bf16.mxu0 0
              %1518 = vmatpush1.bf16.xpose.msra.mxu0 0
              %1519 = vmatprep.subr.bf16.mxu0 0
              %1520 = vmatpush1.bf16.xpose.msra.mxu0 0
              %1521 = vmatprep.subr.bf16.mxu0 0
              %1522 = vmatpush1.bf16.xpose.msra.mxu0 0
              %1523 = vmatprep.subr.bf16.mxu0 0
              %1524 = vmatpush1.bf16.xpose.msra.mxu0 0
              %1525 = vmatprep.mubr.bf16.mxu0 0
              %1526 = vmatmul.mubr.bf16.gmra.mrb[0].mxu0 %v1484
              %v1527 = vpop.f32.mrb[0].mxu0
              %v1528 = vadd.f32 %v1491, %v1527
              %v1529 = vpop.f32.mrb[0].mxu0
              %v1530 = vpop.f32.mrb[0].mxu0
              %v1531 = vadd.f32 %v1492, %v1530
              %v1532 = vpop.f32.mrb[0].mxu0
              %1533 = vdwg.mxu0
              %vm1534 = vcmask 130048
              %v1535 = vsel %vm1534, %v1528, -inf
              %1536 = vmax.xlane.f32.xlu0 %v1535
              %v1537 = vpop.xlane.xlu0 %1536
              %v1538 = vsel %vm1534, %v1531, -inf
              %1539 = vmax.xlane.f32.xlu0 %v1538
              %v1540 = vpop.xlane.xlu0 %1539
              %v1541 = vsub.f32 %v1528, %v1537
              %v1542 = vsub.f32 %v1531, %v1540
              %v1543 = vmul.f32 %v1541, 1.442695
              %v1544 = vpow.pop %v1543
              %v1545 = vmul.f32 %v1542, 1.442695
              %v1546 = vpow.pop %v1545
              %v1547 = vsel %vm1534, %v1544, 0.0
              %1548 = vadd.xlane.f32.xlu0 %v1547
              %v1549 = vpop.xlane.xlu0 %1548
              %v1550 = vsel %vm1534, %v1546, 0.0
              %1551 = vadd.xlane.f32.xlu0 %v1550
              %v1552 = vpop.xlane.xlu0 %1551
              %v1553 = vpack.c.bf16 %v1546, %v1544
              %v1555 = vsel %vm1534, %v1553, 0
              %1557 = vmatprep.subr.bf16.mxu0 0
              %1558 = vmatpush1.bf16.msra.mxu0 %v1490
              %1559 = vmatprep.subr.bf16.mxu0 0
              %1560 = vmatpush1.bf16.msra.mxu0 0
              %1561 = vmatprep.subr.bf16.mxu0 0
              %1562 = vmatpush1.bf16.msra.mxu0 0
              %1563 = vmatprep.subr.bf16.mxu0 0
              %1564 = vmatpush1.bf16.msra.mxu0 0
              %1565 = vmatprep.subr.bf16.mxu0 0
              %1566 = vmatpush1.bf16.msra.mxu0 0
              %1567 = vmatprep.subr.bf16.mxu0 0
              %1568 = vmatpush1.bf16.msra.mxu0 0
              %1569 = vmatprep.subr.bf16.mxu0 0
              %1570 = vmatpush1.bf16.msra.mxu0 0
              %1571 = vmatprep.subr.bf16.mxu0 0
              %1572 = vmatpush1.bf16.msra.mxu0 0
              %1573 = vmatprep.subr.bf16.mxu0 0
              %1574 = vmatpush1.bf16.msra.mxu0 0
              %1575 = vmatprep.subr.bf16.mxu0 0
              %1576 = vmatpush1.bf16.msra.mxu0 0
              %1577 = vmatprep.subr.bf16.mxu0 0
              %1578 = vmatpush1.bf16.msra.mxu0 0
              %1579 = vmatprep.subr.bf16.mxu0 0
              %1580 = vmatpush1.bf16.msra.mxu0 0
              %1581 = vmatprep.subr.bf16.mxu0 0
              %1582 = vmatpush1.bf16.msra.mxu0 0
              %1583 = vmatprep.subr.bf16.mxu0 0
              %1584 = vmatpush1.bf16.msra.mxu0 0
              %1585 = vmatprep.subr.bf16.mxu0 0
              %1586 = vmatpush1.bf16.msra.mxu0 0
              %1587 = vmatprep.subr.bf16.mxu0 0
              %1588 = vmatpush1.bf16.msra.mxu0 0
              %1589 = vmatprep.mubr.bf16.mxu0 0
              %1590 = vmatmul.mubr.bf16.gmra.mrb[0].mxu0 %v1555
              %v1591 = vpop.f32.mrb[0].mxu0
              %v1592 = vadd.f32 0.0, %v1591
              %v1593 = vpop.f32.mrb[0].mxu0
              %v1594 = vpop.f32.mrb[0].mxu0
              %v1595 = vadd.f32 0.0, %v1594
              %v1596 = vpop.f32.mrb[0].mxu0
              %1597 = vdwg.mxu0
              %v1598 = vrcp.pop %v1549
              %v1599 = vrcp.pop %v1552
              %v1600 = vmul.f32 %v1592, %v1598
              %v1601 = vmul.f32 %v1595, %v1599
              %v1602 = vpack.c.bf16 %v1601, %v1600
              %s1603 = smul.addr %s1477, 8
              %s1604 = scalar_lea.vmem [#allocation20], %s1603
              %1605 = vst [vmem:[%s1604] sm:$0xff] %v1602
            $region110: #{tpu_custom_call.1} parent=105 // loop_footer
              %s1481 = sadd.s32 1, %s1477
            $region111: #{tpu_custom_call.1} parent=105 // loop_footer_branch
              %1476 = sbr.rel target = $region107
            $region112: #{tpu_custom_call.1} parent=105 // loop_exit
              _
            %v1606 = vld [vmem:[#allocation20] sm:$0xff]
            %1607 = vst [vmem:[#allocation21] sm:$0xff] %v1606
            %s1608 = scalar_lea.vmem [#allocation20], 8
            %v1609 = vld [vmem:[%s1608] sm:$0xff]
            %1610 = vst [vmem:[#allocation21 + $0x8] sm:$0xff] %v1609
            %v1611 = vld [vmem:[#allocation21] sm:$0xff]
            %v1612 = vld [vmem:[#allocation21 + $0x8] sm:$0xff]
            %v1613 = vld [vmem:[#allocation12] sm:$0xff]
            %v1614 = vld [vmem:[#allocation12 + $0x8] sm:$0xff]
            %v1615 = vld [vmem:[#allocation12 + $0x10] sm:$0xff]
            %v1616 = vld [vmem:[#allocation12 + $0x18] sm:$0xff]
            %v1617 = vld [vmem:[#allocation12 + $0x20] sm:$0xff]
            %v1618 = vld [vmem:[#allocation12 + $0x28] sm:$0xff]
            %v1619 = vld [vmem:[#allocation12 + $0x30] sm:$0xff]
            %v1620 = vld [vmem:[#allocation12 + $0x38] sm:$0xff]
            %v1621 = vld [vmem:[#allocation12 + $0x40] sm:$0xff]
            %v1622 = vld [vmem:[#allocation12 + $0x48] sm:$0xff]
            %v1623 = vld [vmem:[#allocation12 + $0x50] sm:$0xff]
            %v1624 = vld [vmem:[#allocation12 + $0x58] sm:$0xff]
            %v1625 = vld [vmem:[#allocation12 + $0x60] sm:$0xff]
            %v1626 = vld [vmem:[#allocation12 + $0x68] sm:$0xff]
            %v1627 = vld [vmem:[#allocation12 + $0x70] sm:$0xff]
            %v1628 = vld [vmem:[#allocation12 + $0x78] sm:$0xff]
            %v1629 = vld [vmem:[#allocation12 + $0x80] sm:$0xff]
            %v1630 = vld [vmem:[#allocation12 + $0x88] sm:$0xff]
            %v1631 = vld [vmem:[#allocation12 + $0x90] sm:$0xff]
            %v1632 = vld [vmem:[#allocation12 + $0x98] sm:$0xff]
            %v1633 = vld [vmem:[#allocation12 + $0xa0] sm:$0xff]
            %v1634 = vld [vmem:[#allocation12 + $0xa8] sm:$0xff]
            %v1635 = vld [vmem:[#allocation12 + $0xb0] sm:$0xff]
            %v1636 = vld [vmem:[#allocation12 + $0xb8] sm:$0xff]
            %v1637 = vld [vmem:[#allocation12 + $0xc0] sm:$0xff]
            %v1638 = vld [vmem:[#allocation12 + $0xc8] sm:$0xff]
            %v1639 = vld [vmem:[#allocation12 + $0xd0] sm:$0xff]
            %v1640 = vld [vmem:[#allocation12 + $0xd8] sm:$0xff]
            %v1641 = vld [vmem:[#allocation12 + $0xe0] sm:$0xff]
            %v1642 = vld [vmem:[#allocation12 + $0xe8] sm:$0xff]
            %v1643 = vld [vmem:[#allocation12 + $0xf0] sm:$0xff]
            %v1644 = vld [vmem:[#allocation12 + $0xf8] sm:$0xff]
            %v1645 = vld [vmem:[%s6] sm:$0x3]
            %v1647 = vlaneseq
            %v1648 = vshrl.u32 %v1647, 7
            %v1649 = vsub.s32 0, %v1648
            %v1650 = vrot.slane %v1645, %v1649
            %v1651 = vlaneseq
            %v1652 = vshrl.u32 %v1651, 7
            %v1653 = vsub.s32 1, %v1652
            %v1654 = vrot.slane %v1645, %v1653
            %v1689 = vunpack.c.l.b16 %v1613
            %v1690 = vunpack.c.h.b16 %v1613
            %v1691 = vunpack.c.l.b16 %v1614
            %v1692 = vunpack.c.h.b16 %v1614
            %v1693 = vunpack.c.l.b16 %v1615
            %v1694 = vunpack.c.h.b16 %v1615
            %v1695 = vunpack.c.l.b16 %v1616
            %v1696 = vunpack.c.h.b16 %v1616
            %v1697 = vunpack.c.l.b16 %v1617
            %v1698 = vunpack.c.h.b16 %v1617
            %v1699 = vunpack.c.l.b16 %v1618
            %v1700 = vunpack.c.h.b16 %v1618
            %v1701 = vunpack.c.l.b16 %v1619
            %v1702 = vunpack.c.h.b16 %v1619
            %v1703 = vunpack.c.l.b16 %v1620
            %v1704 = vunpack.c.h.b16 %v1620
            %v1705 = vunpack.c.l.b16 %v1621
            %v1706 = vunpack.c.h.b16 %v1621
            %v1707 = vunpack.c.l.b16 %v1622
            %v1708 = vunpack.c.h.b16 %v1622
            %v1709 = vunpack.c.l.b16 %v1623
            %v1710 = vunpack.c.h.b16 %v1623
            %v1711 = vunpack.c.l.b16 %v1624
            %v1712 = vunpack.c.h.b16 %v1624
            %v1713 = vunpack.c.l.b16 %v1625
            %v1714 = vunpack.c.h.b16 %v1625
            %v1715 = vunpack.c.l.b16 %v1626
            %v1716 = vunpack.c.h.b16 %v1626
            %v1717 = vunpack.c.l.b16 %v1627
            %v1718 = vunpack.c.h.b16 %v1627
            %v1719 = vunpack.c.l.b16 %v1628
            %v1720 = vunpack.c.h.b16 %v1628
            %v1721 = vunpack.c.l.b16 %v1629
            %v1722 = vunpack.c.h.b16 %v1629
            %v1723 = vunpack.c.l.b16 %v1630
            %v1724 = vunpack.c.h.b16 %v1630
            %v1725 = vunpack.c.l.b16 %v1631
            %v1726 = vunpack.c.h.b16 %v1631
            %v1727 = vunpack.c.l.b16 %v1632
            %v1728 = vunpack.c.h.b16 %v1632
            %v1729 = vunpack.c.l.b16 %v1633
            %v1730 = vunpack.c.h.b16 %v1633
            %v1731 = vunpack.c.l.b16 %v1634
            %v1732 = vunpack.c.h.b16 %v1634
            %v1733 = vunpack.c.l.b16 %v1635
            %v1734 = vunpack.c.h.b16 %v1635
            %v1735 = vunpack.c.l.b16 %v1636
            %v1736 = vunpack.c.h.b16 %v1636
            %v1737 = vunpack.c.l.b16 %v1637
            %v1738 = vunpack.c.h.b16 %v1637
            %v1739 = vunpack.c.l.b16 %v1638
            %v1740 = vunpack.c.h.b16 %v1638
            %v1741 = vunpack.c.l.b16 %v1639
            %v1742 = vunpack.c.h.b16 %v1639
            %v1743 = vunpack.c.l.b16 %v1640
            %v1744 = vunpack.c.h.b16 %v1640
            %v1745 = vunpack.c.l.b16 %v1641
            %v1746 = vunpack.c.h.b16 %v1641
            %v1747 = vunpack.c.l.b16 %v1642
            %v1748 = vunpack.c.h.b16 %v1642
            %v1749 = vunpack.c.l.b16 %v1643
            %v1750 = vunpack.c.h.b16 %v1643
            %v1751 = vunpack.c.l.b16 %v1644
            %v1752 = vunpack.c.h.b16 %v1644
            %v1753 = vpack.c.b16 %v1691, %v1689
            %v1754 = vpack.c.b16 %v1692, %v1690
            %v1755 = vpack.c.b16 %v1695, %v1693
            %v1756 = vpack.c.b16 %v1696, %v1694
            %v1757 = vpack.c.b16 %v1699, %v1697
            %v1758 = vpack.c.b16 %v1700, %v1698
            %v1759 = vpack.c.b16 %v1703, %v1701
            %v1760 = vpack.c.b16 %v1704, %v1702
            %v1761 = vpack.c.b16 %v1707, %v1705
            %v1762 = vpack.c.b16 %v1708, %v1706
            %v1763 = vpack.c.b16 %v1711, %v1709
            %v1764 = vpack.c.b16 %v1712, %v1710
            %v1765 = vpack.c.b16 %v1715, %v1713
            %v1766 = vpack.c.b16 %v1716, %v1714
            %v1767 = vpack.c.b16 %v1719, %v1717
            %v1768 = vpack.c.b16 %v1720, %v1718
            %v1769 = vpack.c.b16 %v1723, %v1721
            %v1770 = vpack.c.b16 %v1724, %v1722
            %v1771 = vpack.c.b16 %v1727, %v1725
            %v1772 = vpack.c.b16 %v1728, %v1726
            %v1773 = vpack.c.b16 %v1731, %v1729
            %v1774 = vpack.c.b16 %v1732, %v1730
            %v1775 = vpack.c.b16 %v1735, %v1733
            %v1776 = vpack.c.b16 %v1736, %v1734
            %v1777 = vpack.c.b16 %v1739, %v1737
            %v1778 = vpack.c.b16 %v1740, %v1738
            %v1779 = vpack.c.b16 %v1743, %v1741
            %v1780 = vpack.c.b16 %v1744, %v1742
            %v1781 = vpack.c.b16 %v1747, %v1745
            %v1782 = vpack.c.b16 %v1748, %v1746
            %v1783 = vpack.c.b16 %v1751, %v1749
            %v1784 = vpack.c.b16 %v1752, %v1750
            %1817 = vmatprep.subr.bf16.mxu0 %v1754
            %1818 = vmatpush1.bf16.msra.mxu0 %v1753
            %1819 = vmatprep.subr.bf16.mxu0 %v1756
            %1820 = vmatpush1.bf16.msra.mxu0 %v1755
            %1821 = vmatprep.subr.bf16.mxu0 %v1758
            %1822 = vmatpush1.bf16.msra.mxu0 %v1757
            %1823 = vmatprep.subr.bf16.mxu0 %v1760
            %1824 = vmatpush1.bf16.msra.mxu0 %v1759
            %1825 = vmatprep.subr.bf16.mxu0 %v1762
            %1826 = vmatpush1.bf16.msra.mxu0 %v1761
            %1827 = vmatprep.subr.bf16.mxu0 %v1764
            %1828 = vmatpush1.bf16.msra.mxu0 %v1763
            %1829 = vmatprep.subr.bf16.mxu0 %v1766
            %1830 = vmatpush1.bf16.msra.mxu0 %v1765
            %1831 = vmatprep.subr.bf16.mxu0 %v1768
            %1832 = vmatpush1.bf16.msra.mxu0 %v1767
            %1833 = vmatprep.subr.bf16.mxu0 %v1770
            %1834 = vmatpush1.bf16.msra.mxu0 %v1769
            %1835 = vmatprep.subr.bf16.mxu0 %v1772
            %1836 = vmatpush1.bf16.msra.mxu0 %v1771
            %1837 = vmatprep.subr.bf16.mxu0 %v1774
            %1838 = vmatpush1.bf16.msra.mxu0 %v1773
            %1839 = vmatprep.subr.bf16.mxu0 %v1776
            %1840 = vmatpush1.bf16.msra.mxu0 %v1775
            %1841 = vmatprep.subr.bf16.mxu0 %v1778
            %1842 = vmatpush1.bf16.msra.mxu0 %v1777
            %1843 = vmatprep.subr.bf16.mxu0 %v1780
            %1844 = vmatpush1.bf16.msra.mxu0 %v1779
            %1845 = vmatprep.subr.bf16.mxu0 %v1782
            %1846 = vmatpush1.bf16.msra.mxu0 %v1781
            %1847 = vmatprep.subr.bf16.mxu0 %v1784
            %1848 = vmatpush1.bf16.msra.mxu0 %v1783
            %1849 = vmatprep.mubr.bf16.mxu0 %v1612
            %1850 = vmatmul.mubr.bf16.gmra.mrb[0].mxu0 %v1611
            %v1851 = vpop.f32.mrb[0].mxu0
            %v1852 = vadd.f32 %v1650, %v1851
            %v1853 = vpop.f32.mrb[0].mxu0
            %v1854 = vadd.f32 %v1654, %v1853
            %v1855 = vpop.f32.mrb[0].mxu0
            %v1856 = vadd.f32 %v1650, %v1855
            %v1857 = vpop.f32.mrb[0].mxu0
            %v1858 = vadd.f32 %v1654, %v1857
            %1859 = vdwg.mxu0
            %v1860 = vld [vmem:[%s526] sm:$0xff]
            %v1861 = vld [vmem:[%s526 + $0x8] sm:$0xff]
            %v1862 = vld [vmem:[%s526 + $0x10] sm:$0xff]
            %v1863 = vld [vmem:[%s526 + $0x18] sm:$0xff]
            %v1864 = vadd.f32 %v1860, %v1852
            %v1865 = vadd.f32 %v1861, %v1854
            %v1866 = vadd.f32 %v1862, %v1856
            %v1867 = vadd.f32 %v1863, %v1858
            %v1868 = vld [vmem:[%s7] sm:$0x3]
            %v1869 = vld [vmem:[%s8] sm:$0x3]
            %v1870 = vadd.f32 %v1864, %v1865
            %1871 = vadd.xlane.f32.xlu0 %v1870
            %v1872 = vpop.xlane.xlu0 %1871
            %v1873 = vadd.f32 %v1866, %v1867
            %1874 = vadd.xlane.f32.xlu0 %v1873
            %v1875 = vpop.xlane.xlu0 %1874
            %v1876 = vmul.f32 %v1872, %v641
            %v1877 = vmul.f32 %v1875, %v641
            %v1878 = vmul.f32 %v1864, %v1864
            %v1879 = vmul.f32 %v1865, %v1865
            %v1880 = vmul.f32 %v1866, %v1866
            %v1881 = vmul.f32 %v1867, %v1867
            %v1882 = vadd.f32 %v1878, %v1879
            %1883 = vadd.xlane.f32.xlu0 %v1882
            %v1884 = vpop.xlane.xlu0 %1883
            %v1885 = vadd.f32 %v1880, %v1881
            %1886 = vadd.xlane.f32.xlu0 %v1885
            %v1887 = vpop.xlane.xlu0 %1886
            %v1888 = vmul.f32 %v1884, %v641
            %v1889 = vmul.f32 %v1887, %v641
            %v1890 = vmul.f32 %v1876, %v1876
            %v1891 = vmul.f32 %v1877, %v1877
            %v1892 = vsub.f32 %v1888, %v1890
            %v1893 = vsub.f32 %v1889, %v1891
            %v1894 = vmax.f32 %v1892, 0.0
            %v1895 = vmax.f32 %v1893, 0.0
            %v1896 = vsub.f32 %v1864, %v1876
            %v1897 = vsub.f32 %v1865, %v1876
            %v1898 = vsub.f32 %v1866, %v1877
            %v1899 = vsub.f32 %v1867, %v1877
            %v1900 = vadd.f32 %v1894, 1e-05
            %v1901 = vadd.f32 %v1895, 1e-05
            %v1902 = vrsqrt.pop %v1900
            %v1903 = vrsqrt.pop %v1901
            %v1904 = vmul.f32 %v1896, %v1902
            %v1905 = vmul.f32 %v1897, %v1902
            %v1906 = vmul.f32 %v1898, %v1903
            %v1907 = vmul.f32 %v1899, %v1903
            %v1909 = vlaneseq
            %v1910 = vshrl.u32 %v1909, 7
            %v1911 = vsub.s32 0, %v1910
            %v1912 = vrot.slane %v1868, %v1911
            %v1913 = vlaneseq
            %v1914 = vshrl.u32 %v1913, 7
            %v1915 = vsub.s32 1, %v1914
            %v1916 = vrot.slane %v1868, %v1915
            %v1919 = vmul.f32 %v1904, %v1912
            %v1920 = vmul.f32 %v1905, %v1916
            %v1921 = vmul.f32 %v1906, %v1912
            %v1922 = vmul.f32 %v1907, %v1916
            %v1924 = vlaneseq
            %v1925 = vshrl.u32 %v1924, 7
            %v1926 = vsub.s32 0, %v1925
            %v1927 = vrot.slane %v1869, %v1926
            %v1928 = vlaneseq
            %v1929 = vshrl.u32 %v1928, 7
            %v1930 = vsub.s32 1, %v1929
            %v1931 = vrot.slane %v1869, %v1930
            %v1934 = vadd.f32 %v1919, %v1927
            %v1935 = vadd.f32 %v1920, %v1931
            %v1936 = vadd.f32 %v1921, %v1927
            %v1937 = vadd.f32 %v1922, %v1931
            %v1938 = vpack.c.bf16 %v1936, %v1934
            %v1939 = vpack.c.bf16 %v1937, %v1935
            %1940 = vst [vmem:[#allocation2] sm:$0xff] %v1938
            %1941 = vst [vmem:[#allocation2 + $0x8] sm:$0xff] %v1939
            %v1942 = vld [vmem:[%s12] sm:$0x3]
            %v1944 = vlaneseq
            %v1945 = vshrl.u32 %v1944, 7
            %v1946 = vsub.s32 0, %v1945
            %v1947 = vrot.slane %v1942, %v1946
            %v1948 = vlaneseq
            %v1949 = vshrl.u32 %v1948, 7
            %v1950 = vsub.s32 1, %v1949
            %v1951 = vrot.slane %v1942, %v1950
            %v1954 = vadd.f32 %v1864, %v1947
            %v1955 = vadd.f32 %v1865, %v1951
            %v1956 = vadd.f32 %v1866, %v1947
            %v1957 = vadd.f32 %v1867, %v1951
            %1958 = vst [vmem:[#allocation3] sm:$0xff] %v1954
            %1959 = vst [vmem:[#allocation3 + $0x8] sm:$0xff] %v1955
            %1960 = vst [vmem:[#allocation3 + $0x10] sm:$0xff] %v1956
            %1961 = vst [vmem:[#allocation3 + $0x18] sm:$0xff] %v1957
        $region104: #{tpu_custom_call.1} parent=71 // pred_fallthru
          _
        %v1962 = vld [vmem:[#allocation2] sm:$0xff]
        %v1963 = vld [vmem:[#allocation2 + $0x8] sm:$0xff]
        %v1964 = vld [vmem:[%s551] sm:$0xff]
        %v1965 = vld [vmem:[%s551 + $0x8] sm:$0xff]
        %v1966 = vld [vmem:[%s551 + $0x10] sm:$0xff]
        %v1967 = vld [vmem:[%s551 + $0x18] sm:$0xff]
        %v1968 = vld [vmem:[%s551 + $0x20] sm:$0xff]
        %v1969 = vld [vmem:[%s551 + $0x28] sm:$0xff]
        %v1970 = vld [vmem:[%s551 + $0x30] sm:$0xff]
        %v1971 = vld [vmem:[%s551 + $0x38] sm:$0xff]
        %v1972 = vld [vmem:[%s551 + $0x40] sm:$0xff]
        %v1973 = vld [vmem:[%s551 + $0x48] sm:$0xff]
        %v1974 = vld [vmem:[%s551 + $0x50] sm:$0xff]
        %v1975 = vld [vmem:[%s551 + $0x58] sm:$0xff]
        %v1976 = vld [vmem:[%s551 + $0x60] sm:$0xff]
        %v1977 = vld [vmem:[%s551 + $0x68] sm:$0xff]
        %v1978 = vld [vmem:[%s551 + $0x70] sm:$0xff]
        %v1979 = vld [vmem:[%s551 + $0x78] sm:$0xff]
        %v1980 = vld [vmem:[%s551 + $0x80] sm:$0xff]
        %v1981 = vld [vmem:[%s551 + $0x88] sm:$0xff]
        %v1982 = vld [vmem:[%s551 + $0x90] sm:$0xff]
        %v1983 = vld [vmem:[%s551 + $0x98] sm:$0xff]
        %v1984 = vld [vmem:[%s551 + $0xa0] sm:$0xff]
        %v1985 = vld [vmem:[%s551 + $0xa8] sm:$0xff]
        %v1986 = vld [vmem:[%s551 + $0xb0] sm:$0xff]
        %v1987 = vld [vmem:[%s551 + $0xb8] sm:$0xff]
        %v1988 = vld [vmem:[%s551 + $0xc0] sm:$0xff]
        %v1989 = vld [vmem:[%s551 + $0xc8] sm:$0xff]
        %v1990 = vld [vmem:[%s551 + $0xd0] sm:$0xff]
        %v1991 = vld [vmem:[%s551 + $0xd8] sm:$0xff]
        %v1992 = vld [vmem:[%s551 + $0xe0] sm:$0xff]
        %v1993 = vld [vmem:[%s551 + $0xe8] sm:$0xff]
        %v1994 = vld [vmem:[%s551 + $0xf0] sm:$0xff]
        %v1995 = vld [vmem:[%s551 + $0xf8] sm:$0xff]
        %v1996 = vld [vmem:[%s621] sm:$0x3]
        %v1998 = vlaneseq
        %v1999 = vshrl.u32 %v1998, 7
        %v2000 = vsub.s32 0, %v1999
        %v2001 = vrot.slane %v1996, %v2000
        %v2002 = vlaneseq
        %v2003 = vshrl.u32 %v2002, 7
        %v2004 = vsub.s32 1, %v2003
        %v2005 = vrot.slane %v1996, %v2004
        %v2040 = vunpack.c.l.b16 %v1964
        %v2041 = vunpack.c.h.b16 %v1964
        %v2042 = vunpack.c.l.b16 %v1965
        %v2043 = vunpack.c.h.b16 %v1965
        %v2044 = vunpack.c.l.b16 %v1966
        %v2045 = vunpack.c.h.b16 %v1966
        %v2046 = vunpack.c.l.b16 %v1967
        %v2047 = vunpack.c.h.b16 %v1967
        %v2048 = vunpack.c.l.b16 %v1968
        %v2049 = vunpack.c.h.b16 %v1968
        %v2050 = vunpack.c.l.b16 %v1969
        %v2051 = vunpack.c.h.b16 %v1969
        %v2052 = vunpack.c.l.b16 %v1970
        %v2053 = vunpack.c.h.b16 %v1970
        %v2054 = vunpack.c.l.b16 %v1971
        %v2055 = vunpack.c.h.b16 %v1971
        %v2056 = vunpack.c.l.b16 %v1972
        %v2057 = vunpack.c.h.b16 %v1972
        %v2058 = vunpack.c.l.b16 %v1973
        %v2059 = vunpack.c.h.b16 %v1973
        %v2060 = vunpack.c.l.b16 %v1974
        %v2061 = vunpack.c.h.b16 %v1974
        %v2062 = vunpack.c.l.b16 %v1975
        %v2063 = vunpack.c.h.b16 %v1975
        %v2064 = vunpack.c.l.b16 %v1976
        %v2065 = vunpack.c.h.b16 %v1976
        %v2066 = vunpack.c.l.b16 %v1977
        %v2067 = vunpack.c.h.b16 %v1977
        %v2068 = vunpack.c.l.b16 %v1978
        %v2069 = vunpack.c.h.b16 %v1978
        %v2070 = vunpack.c.l.b16 %v1979
        %v2071 = vunpack.c.h.b16 %v1979
        %v2072 = vunpack.c.l.b16 %v1980
        %v2073 = vunpack.c.h.b16 %v1980
        %v2074 = vunpack.c.l.b16 %v1981
        %v2075 = vunpack.c.h.b16 %v1981
        %v2076 = vunpack.c.l.b16 %v1982
        %v2077 = vunpack.c.h.b16 %v1982
        %v2078 = vunpack.c.l.b16 %v1983
        %v2079 = vunpack.c.h.b16 %v1983
        %v2080 = vunpack.c.l.b16 %v1984
        %v2081 = vunpack.c.h.b16 %v1984
        %v2082 = vunpack.c.l.b16 %v1985
        %v2083 = vunpack.c.h.b16 %v1985
        %v2084 = vunpack.c.l.b16 %v1986
        %v2085 = vunpack.c.h.b16 %v1986
        %v2086 = vunpack.c.l.b16 %v1987
        %v2087 = vunpack.c.h.b16 %v1987
        %v2088 = vunpack.c.l.b16 %v1988
        %v2089 = vunpack.c.h.b16 %v1988
        %v2090 = vunpack.c.l.b16 %v1989
        %v2091 = vunpack.c.h.b16 %v1989
        %v2092 = vunpack.c.l.b16 %v1990
        %v2093 = vunpack.c.h.b16 %v1990
        %v2094 = vunpack.c.l.b16 %v1991
        %v2095 = vunpack.c.h.b16 %v1991
        %v2096 = vunpack.c.l.b16 %v1992
        %v2097 = vunpack.c.h.b16 %v1992
        %v2098 = vunpack.c.l.b16 %v1993
        %v2099 = vunpack.c.h.b16 %v1993
        %v2100 = vunpack.c.l.b16 %v1994
        %v2101 = vunpack.c.h.b16 %v1994
        %v2102 = vunpack.c.l.b16 %v1995
        %v2103 = vunpack.c.h.b16 %v1995
        %v2104 = vpack.c.b16 %v2042, %v2040
        %v2105 = vpack.c.b16 %v2043, %v2041
        %v2106 = vpack.c.b16 %v2046, %v2044
        %v2107 = vpack.c.b16 %v2047, %v2045
        %v2108 = vpack.c.b16 %v2050, %v2048
        %v2109 = vpack.c.b16 %v2051, %v2049
        %v2110 = vpack.c.b16 %v2054, %v2052
        %v2111 = vpack.c.b16 %v2055, %v2053
        %v2112 = vpack.c.b16 %v2058, %v2056
        %v2113 = vpack.c.b16 %v2059, %v2057
        %v2114 = vpack.c.b16 %v2062, %v2060
        %v2115 = vpack.c.b16 %v2063, %v2061
        %v2116 = vpack.c.b16 %v2066, %v2064
        %v2117 = vpack.c.b16 %v2067, %v2065
        %v2118 = vpack.c.b16 %v2070, %v2068
        %v2119 = vpack.c.b16 %v2071, %v2069
        %v2120 = vpack.c.b16 %v2074, %v2072
        %v2121 = vpack.c.b16 %v2075, %v2073
        %v2122 = vpack.c.b16 %v2078, %v2076
        %v2123 = vpack.c.b16 %v2079, %v2077
        %v2124 = vpack.c.b16 %v2082, %v2080
        %v2125 = vpack.c.b16 %v2083, %v2081
        %v2126 = vpack.c.b16 %v2086, %v2084
        %v2127 = vpack.c.b16 %v2087, %v2085
        %v2128 = vpack.c.b16 %v2090, %v2088
        %v2129 = vpack.c.b16 %v2091, %v2089
        %v2130 = vpack.c.b16 %v2094, %v2092
        %v2131 = vpack.c.b16 %v2095, %v2093
        %v2132 = vpack.c.b16 %v2098, %v2096
        %v2133 = vpack.c.b16 %v2099, %v2097
        %v2134 = vpack.c.b16 %v2102, %v2100
        %v2135 = vpack.c.b16 %v2103, %v2101
        %2168 = vmatprep.subr.bf16.mxu0 %v2105
        %2169 = vmatpush1.bf16.msra.mxu0 %v2104
        %2170 = vmatprep.subr.bf16.mxu0 %v2107
        %2171 = vmatpush1.bf16.msra.mxu0 %v2106
        %2172 = vmatprep.subr.bf16.mxu0 %v2109
        %2173 = vmatpush1.bf16.msra.mxu0 %v2108
        %2174 = vmatprep.subr.bf16.mxu0 %v2111
        %2175 = vmatpush1.bf16.msra.mxu0 %v2110
        %2176 = vmatprep.subr.bf16.mxu0 %v2113
        %2177 = vmatpush1.bf16.msra.mxu0 %v2112
        %2178 = vmatprep.subr.bf16.mxu0 %v2115
        %2179 = vmatpush1.bf16.msra.mxu0 %v2114
        %2180 = vmatprep.subr.bf16.mxu0 %v2117
        %2181 = vmatpush1.bf16.msra.mxu0 %v2116
        %2182 = vmatprep.subr.bf16.mxu0 %v2119
        %2183 = vmatpush1.bf16.msra.mxu0 %v2118
        %2184 = vmatprep.subr.bf16.mxu0 %v2121
        %2185 = vmatpush1.bf16.msra.mxu0 %v2120
        %2186 = vmatprep.subr.bf16.mxu0 %v2123
        %2187 = vmatpush1.bf16.msra.mxu0 %v2122
        %2188 = vmatprep.subr.bf16.mxu0 %v2125
        %2189 = vmatpush1.bf16.msra.mxu0 %v2124
        %2190 = vmatprep.subr.bf16.mxu0 %v2127
        %2191 = vmatpush1.bf16.msra.mxu0 %v2126
        %2192 = vmatprep.subr.bf16.mxu0 %v2129
        %2193 = vmatpush1.bf16.msra.mxu0 %v2128
        %2194 = vmatprep.subr.bf16.mxu0 %v2131
        %2195 = vmatpush1.bf16.msra.mxu0 %v2130
        %2196 = vmatprep.subr.bf16.mxu0 %v2133
        %2197 = vmatpush1.bf16.msra.mxu0 %v2132
        %2198 = vmatprep.subr.bf16.mxu0 %v2135
        %2199 = vmatpush1.bf16.msra.mxu0 %v2134
        %2200 = vmatprep.mubr.bf16.mxu0 %v1963
        %2201 = vmatmul.mubr.bf16.gmra.mrb[0].mxu0 %v1962
        %v2202 = vpop.f32.mrb[0].mxu0
        %v2203 = vadd.f32 %v2001, %v2202
        %v2204 = vpop.f32.mrb[0].mxu0
        %v2205 = vadd.f32 %v2005, %v2204
        %v2206 = vpop.f32.mrb[0].mxu0
        %v2207 = vadd.f32 %v2001, %v2206
        %v2208 = vpop.f32.mrb[0].mxu0
        %v2209 = vadd.f32 %v2005, %v2208
        %2210 = vdwg.mxu0
        %v2211 = vmul.f32 %v2203, 0.5
        %v2212 = vmul.f32 %v2205, 0.5
        %v2213 = vmul.f32 %v2207, 0.5
        %v2214 = vmul.f32 %v2209, 0.5
        %v2215 = vmul.f32 %v2203, 0.044715
        %v2216 = vmul.f32 %v2205, 0.044715
        %v2217 = vmul.f32 %v2207, 0.044715
        %v2218 = vmul.f32 %v2209, 0.044715
        %v2219 = vmul.f32 %v2215, %v2203
        %v2220 = vmul.f32 %v2216, %v2205
        %v2221 = vmul.f32 %v2217, %v2207
        %v2222 = vmul.f32 %v2218, %v2209
        %v2223 = vmul.f32 %v2219, %v2203
        %v2224 = vmul.f32 %v2220, %v2205
        %v2225 = vmul.f32 %v2221, %v2207
        %v2226 = vmul.f32 %v2222, %v2209
        %v2227 = vadd.f32 %v2203, %v2223
        %v2228 = vadd.f32 %v2205, %v2224
        %v2229 = vadd.f32 %v2207, %v2225
        %v2230 = vadd.f32 %v2209, %v2226
        %v2231 = vmul.f32 %v2227, 0.7978846
        %v2232 = vmul.f32 %v2228, 0.7978846
        %v2233 = vmul.f32 %v2229, 0.7978846
        %v2234 = vmul.f32 %v2230, 0.7978846
        %v2235 = vtanh.pop %v2231
        %v2236 = vtanh.pop %v2232
        %v2237 = vtanh.pop %v2233
        %v2238 = vtanh.pop %v2234
        %v2239 = vadd.f32 %v2235, 1.0
        %v2240 = vadd.f32 %v2236, 1.0
        %v2241 = vadd.f32 %v2237, 1.0
        %v2242 = vadd.f32 %v2238, 1.0
        %v2243 = vmul.f32 %v2211, %v2239
        %v2244 = vmul.f32 %v2212, %v2240
        %v2245 = vmul.f32 %v2213, %v2241
        %v2246 = vmul.f32 %v2214, %v2242
        %v2247 = vpack.c.bf16 %v2245, %v2243
        %v2248 = vpack.c.bf16 %v2246, %v2244
        %v2249 = vld [vmem:[#allocation3] sm:$0xff]
        %v2250 = vld [vmem:[#allocation3 + $0x8] sm:$0xff]
        %v2251 = vld [vmem:[#allocation3 + $0x10] sm:$0xff]
        %v2252 = vld [vmem:[#allocation3 + $0x18] sm:$0xff]
        %v2253 = vld [vmem:[%s560] sm:$0xff]
        %v2254 = vld [vmem:[%s560 + $0x8] sm:$0xff]
        %v2255 = vld [vmem:[%s560 + $0x10] sm:$0xff]
        %v2256 = vld [vmem:[%s560 + $0x18] sm:$0xff]
        %v2257 = vld [vmem:[%s560 + $0x20] sm:$0xff]
        %v2258 = vld [vmem:[%s560 + $0x28] sm:$0xff]
        %v2259 = vld [vmem:[%s560 + $0x30] sm:$0xff]
        %v2260 = vld [vmem:[%s560 + $0x38] sm:$0xff]
        %v2261 = vld [vmem:[%s560 + $0x40] sm:$0xff]
        %v2262 = vld [vmem:[%s560 + $0x48] sm:$0xff]
        %v2263 = vld [vmem:[%s560 + $0x50] sm:$0xff]
        %v2264 = vld [vmem:[%s560 + $0x58] sm:$0xff]
        %v2265 = vld [vmem:[%s560 + $0x60] sm:$0xff]
        %v2266 = vld [vmem:[%s560 + $0x68] sm:$0xff]
        %v2267 = vld [vmem:[%s560 + $0x70] sm:$0xff]
        %v2268 = vld [vmem:[%s560 + $0x78] sm:$0xff]
        %v2269 = vld [vmem:[%s560 + $0x80] sm:$0xff]
        %v2270 = vld [vmem:[%s560 + $0x88] sm:$0xff]
        %v2271 = vld [vmem:[%s560 + $0x90] sm:$0xff]
        %v2272 = vld [vmem:[%s560 + $0x98] sm:$0xff]
        %v2273 = vld [vmem:[%s560 + $0xa0] sm:$0xff]
        %v2274 = vld [vmem:[%s560 + $0xa8] sm:$0xff]
        %v2275 = vld [vmem:[%s560 + $0xb0] sm:$0xff]
        %v2276 = vld [vmem:[%s560 + $0xb8] sm:$0xff]
        %v2277 = vld [vmem:[%s560 + $0xc0] sm:$0xff]
        %v2278 = vld [vmem:[%s560 + $0xc8] sm:$0xff]
        %v2279 = vld [vmem:[%s560 + $0xd0] sm:$0xff]
        %v2280 = vld [vmem:[%s560 + $0xd8] sm:$0xff]
        %v2281 = vld [vmem:[%s560 + $0xe0] sm:$0xff]
        %v2282 = vld [vmem:[%s560 + $0xe8] sm:$0xff]
        %v2283 = vld [vmem:[%s560 + $0xf0] sm:$0xff]
        %v2284 = vld [vmem:[%s560 + $0xf8] sm:$0xff]
        %v2317 = vunpack.c.l.b16 %v2253
        %v2318 = vunpack.c.h.b16 %v2253
        %v2319 = vunpack.c.l.b16 %v2254
        %v2320 = vunpack.c.h.b16 %v2254
        %v2321 = vunpack.c.l.b16 %v2255
        %v2322 = vunpack.c.h.b16 %v2255
        %v2323 = vunpack.c.l.b16 %v2256
        %v2324 = vunpack.c.h.b16 %v2256
        %v2325 = vunpack.c.l.b16 %v2257
        %v2326 = vunpack.c.h.b16 %v2257
        %v2327 = vunpack.c.l.b16 %v2258
        %v2328 = vunpack.c.h.b16 %v2258
        %v2329 = vunpack.c.l.b16 %v2259
        %v2330 = vunpack.c.h.b16 %v2259
        %v2331 = vunpack.c.l.b16 %v2260
        %v2332 = vunpack.c.h.b16 %v2260
        %v2333 = vunpack.c.l.b16 %v2261
        %v2334 = vunpack.c.h.b16 %v2261
        %v2335 = vunpack.c.l.b16 %v2262
        %v2336 = vunpack.c.h.b16 %v2262
        %v2337 = vunpack.c.l.b16 %v2263
        %v2338 = vunpack.c.h.b16 %v2263
        %v2339 = vunpack.c.l.b16 %v2264
        %v2340 = vunpack.c.h.b16 %v2264
        %v2341 = vunpack.c.l.b16 %v2265
        %v2342 = vunpack.c.h.b16 %v2265
        %v2343 = vunpack.c.l.b16 %v2266
        %v2344 = vunpack.c.h.b16 %v2266
        %v2345 = vunpack.c.l.b16 %v2267
        %v2346 = vunpack.c.h.b16 %v2267
        %v2347 = vunpack.c.l.b16 %v2268
        %v2348 = vunpack.c.h.b16 %v2268
        %v2349 = vunpack.c.l.b16 %v2269
        %v2350 = vunpack.c.h.b16 %v2269
        %v2351 = vunpack.c.l.b16 %v2270
        %v2352 = vunpack.c.h.b16 %v2270
        %v2353 = vunpack.c.l.b16 %v2271
        %v2354 = vunpack.c.h.b16 %v2271
        %v2355 = vunpack.c.l.b16 %v2272
        %v2356 = vunpack.c.h.b16 %v2272
        %v2357 = vunpack.c.l.b16 %v2273
        %v2358 = vunpack.c.h.b16 %v2273
        %v2359 = vunpack.c.l.b16 %v2274
        %v2360 = vunpack.c.h.b16 %v2274
        %v2361 = vunpack.c.l.b16 %v2275
        %v2362 = vunpack.c.h.b16 %v2275
        %v2363 = vunpack.c.l.b16 %v2276
        %v2364 = vunpack.c.h.b16 %v2276
        %v2365 = vunpack.c.l.b16 %v2277
        %v2366 = vunpack.c.h.b16 %v2277
        %v2367 = vunpack.c.l.b16 %v2278
        %v2368 = vunpack.c.h.b16 %v2278
        %v2369 = vunpack.c.l.b16 %v2279
        %v2370 = vunpack.c.h.b16 %v2279
        %v2371 = vunpack.c.l.b16 %v2280
        %v2372 = vunpack.c.h.b16 %v2280
        %v2373 = vunpack.c.l.b16 %v2281
        %v2374 = vunpack.c.h.b16 %v2281
        %v2375 = vunpack.c.l.b16 %v2282
        %v2376 = vunpack.c.h.b16 %v2282
        %v2377 = vunpack.c.l.b16 %v2283
        %v2378 = vunpack.c.h.b16 %v2283
        %v2379 = vunpack.c.l.b16 %v2284
        %v2380 = vunpack.c.h.b16 %v2284
        %v2381 = vpack.c.b16 %v2319, %v2317
        %v2382 = vpack.c.b16 %v2320, %v2318
        %v2383 = vpack.c.b16 %v2323, %v2321
        %v2384 = vpack.c.b16 %v2324, %v2322
        %v2385 = vpack.c.b16 %v2327, %v2325
        %v2386 = vpack.c.b16 %v2328, %v2326
        %v2387 = vpack.c.b16 %v2331, %v2329
        %v2388 = vpack.c.b16 %v2332, %v2330
        %v2389 = vpack.c.b16 %v2335, %v2333
        %v2390 = vpack.c.b16 %v2336, %v2334
        %v2391 = vpack.c.b16 %v2339, %v2337
        %v2392 = vpack.c.b16 %v2340, %v2338
        %v2393 = vpack.c.b16 %v2343, %v2341
        %v2394 = vpack.c.b16 %v2344, %v2342
        %v2395 = vpack.c.b16 %v2347, %v2345
        %v2396 = vpack.c.b16 %v2348, %v2346
        %v2397 = vpack.c.b16 %v2351, %v2349
        %v2398 = vpack.c.b16 %v2352, %v2350
        %v2399 = vpack.c.b16 %v2355, %v2353
        %v2400 = vpack.c.b16 %v2356, %v2354
        %v2401 = vpack.c.b16 %v2359, %v2357
        %v2402 = vpack.c.b16 %v2360, %v2358
        %v2403 = vpack.c.b16 %v2363, %v2361
        %v2404 = vpack.c.b16 %v2364, %v2362
        %v2405 = vpack.c.b16 %v2367, %v2365
        %v2406 = vpack.c.b16 %v2368, %v2366
        %v2407 = vpack.c.b16 %v2371, %v2369
        %v2408 = vpack.c.b16 %v2372, %v2370
        %v2409 = vpack.c.b16 %v2375, %v2373
        %v2410 = vpack.c.b16 %v2376, %v2374
        %v2411 = vpack.c.b16 %v2379, %v2377
        %v2412 = vpack.c.b16 %v2380, %v2378
        %2445 = vmatprep.subr.bf16.mxu0 %v2382
        %2446 = vmatpush1.bf16.msra.mxu0 %v2381
        %2447 = vmatprep.subr.bf16.mxu0 %v2384
        %2448 = vmatpush1.bf16.msra.mxu0 %v2383
        %2449 = vmatprep.subr.bf16.mxu0 %v2386
        %2450 = vmatpush1.bf16.msra.mxu0 %v2385
        %2451 = vmatprep.subr.bf16.mxu0 %v2388
        %2452 = vmatpush1.bf16.msra.mxu0 %v2387
        %2453 = vmatprep.subr.bf16.mxu0 %v2390
        %2454 = vmatpush1.bf16.msra.mxu0 %v2389
        %2455 = vmatprep.subr.bf16.mxu0 %v2392
        %2456 = vmatpush1.bf16.msra.mxu0 %v2391
        %2457 = vmatprep.subr.bf16.mxu0 %v2394
        %2458 = vmatpush1.bf16.msra.mxu0 %v2393
        %2459 = vmatprep.subr.bf16.mxu0 %v2396
        %2460 = vmatpush1.bf16.msra.mxu0 %v2395
        %2461 = vmatprep.subr.bf16.mxu0 %v2398
        %2462 = vmatpush1.bf16.msra.mxu0 %v2397
        %2463 = vmatprep.subr.bf16.mxu0 %v2400
        %2464 = vmatpush1.bf16.msra.mxu0 %v2399
        %2465 = vmatprep.subr.bf16.mxu0 %v2402
        %2466 = vmatpush1.bf16.msra.mxu0 %v2401
        %2467 = vmatprep.subr.bf16.mxu0 %v2404
        %2468 = vmatpush1.bf16.msra.mxu0 %v2403
        %2469 = vmatprep.subr.bf16.mxu0 %v2406
        %2470 = vmatpush1.bf16.msra.mxu0 %v2405
        %2471 = vmatprep.subr.bf16.mxu0 %v2408
        %2472 = vmatpush1.bf16.msra.mxu0 %v2407
        %2473 = vmatprep.subr.bf16.mxu0 %v2410
        %2474 = vmatpush1.bf16.msra.mxu0 %v2409
        %2475 = vmatprep.subr.bf16.mxu0 %v2412
        %2476 = vmatpush1.bf16.msra.mxu0 %v2411
        %2477 = vmatprep.mubr.bf16.mxu0 %v2248
        %2478 = vmatmul.mubr.bf16.gmra.mrb[0].mxu0 %v2247
        %v2479 = vpop.f32.mrb[0].mxu0
        %v2480 = vadd.f32 0.0, %v2479
        %v2481 = vpop.f32.mrb[0].mxu0
        %v2482 = vadd.f32 0.0, %v2481
        %v2483 = vpop.f32.mrb[0].mxu0
        %v2484 = vadd.f32 0.0, %v2483
        %v2485 = vpop.f32.mrb[0].mxu0
        %v2486 = vadd.f32 0.0, %v2485
        %2487 = vdwg.mxu0
        %v2488 = vadd.f32 %v2249, %v2480
        %v2489 = vadd.f32 %v2250, %v2482
        %v2490 = vadd.f32 %v2251, %v2484
        %v2491 = vadd.f32 %v2252, %v2486
        %2492 = vst [vmem:[#allocation3] sm:$0xff] %v2488
        %2493 = vst [vmem:[#allocation3 + $0x8] sm:$0xff] %v2489
        %2494 = vst [vmem:[#allocation3 + $0x10] sm:$0xff] %v2490
        %2495 = vst [vmem:[#allocation3 + $0x18] sm:$0xff] %v2491
        %p2496 = scmp.eq.s32.totalorder %s40, 1
        // Predicated region
        $region113: #{tpu_custom_call.1} parent=71 // pred_check
          %p2497 = pneg %p2496
        $region114: #{tpu_custom_call.1} parent=71 // pred_check_branch
          %2499 = sbr.rel (%p2497) target = $region116
        $region115: #{tpu_custom_call.1} parent=71 // pred_region
          %v2500 = vld [vmem:[#allocation3] sm:$0xff]
          %v2501 = vld [vmem:[#allocation3 + $0x8] sm:$0xff]
          %v2502 = vld [vmem:[#allocation3 + $0x10] sm:$0xff]
          %v2503 = vld [vmem:[#allocation3 + $0x18] sm:$0xff]
          %2504 = vst [vmem:[%s616] sm:$0xff] %v2500
          %2505 = vst [vmem:[%s616 + $0x8] sm:$0xff] %v2501
          %2506 = vst [vmem:[%s616 + $0x10] sm:$0xff] %v2502
          %2507 = vst [vmem:[%s616 + $0x18] sm:$0xff] %v2503
        $region116: #{tpu_custom_call.1} parent=71 // pred_fallthru
          _
        %s2508 = sand.u32 %s348, 1
        %s2509 = scalar_lea.sflag [#allocation6], %s2508
        %s2510 = sand.u32 %s348, 1
        %s2511 = smul.addr %s2510, 32
        %s2512 = scalar_lea.vmem [#allocation16], %s2511
        // Predicated region
        $region117: #{tpu_custom_call.1} parent=71 // pred_check
          %p2513 = pneg %p358
        $region118: #{tpu_custom_call.1} parent=71 // pred_check_branch
          %2515 = sbr.rel (%p2513) target = $region120
        $region119: #{tpu_custom_call.1} parent=71 // pred_region
          %s2517 = ssub.s32 512, 512
          %2518 = vsyncadd %s2509, %s2517
          %s2519 = smul.addr %s39, 4
          %s2520 = smul.addr %s2519, 128
          %s2521 = scalar_lea.hbm %s13, %s2520
          %s2522 = sshll.u32 %s2512, 4
          %s2523 = int_to_ptr.vmem [resolvable:$true] %s2522
          %2528 = dma.vmem_to_hbm [thread:$0]  %s2523, 512, %s2521, %s2509, 256, 256, 16
        $region120: #{tpu_custom_call.1} parent=71 // pred_fallthru
          _
      $region72: #{tpu_custom_call.1} parent=5 // pred_fallthru
        _
      %p2529 = scmp.le.s32.totalorder 2, %s30
      // Predicated region
      $region121: #{tpu_custom_call.1} parent=5 // pred_check
        %p2530 = pneg %p2529
      $region122: #{tpu_custom_call.1} parent=5 // pred_check_branch
        %2532 = sbr.rel (%p2530) target = $region124
      $region123: #{tpu_custom_call.1} parent=5 // pred_region
        %s2533 = ssub.s32 %s30, 2
        // Predicated region
        $region125: #{tpu_custom_call.1} parent=123 // pred_check
          %p2534 = pneg %p364
        $region126: #{tpu_custom_call.1} parent=123 // pred_check_branch
          %2536 = sbr.rel (%p2534) target = $region128
        $region127: #{tpu_custom_call.1} parent=123 // pred_region
          %s2537 = sand.u32 %s349, 1
          %s2538 = scalar_lea.sflag [#allocation6], %s2537
          %s2539 = sand.u32 %s349, 1
          %s2540 = smul.addr %s2539, 32
          %s2541 = scalar_lea.vmem [#allocation16], %s2540
          %2542 = dma.done %s2538, 512
        $region128: #{tpu_custom_call.1} parent=123 // pred_fallthru
          _
      $region124: #{tpu_custom_call.1} parent=5 // pred_fallthru
        _
    $region6: #{tpu_custom_call.1} parent=1 // loop_footer
      %s34 = sadd.s32 1, %s30
    $region7: #{tpu_custom_call.1} parent=1 // loop_footer_branch
      %29 = sbr.rel target = $region3
    $region8: #{tpu_custom_call.1} parent=1 // loop_exit
      _
    %2543 = vsyncpa [#allocation5], 1
    %s2544 = scalar_lea.sflag [#allocation5], 1
    %2545 = vsyncpa %s2544, 1
    %2546 = vsyncpa [#allocation8], 1
    %2547 = vsyncpa [#allocation11], 1
    %2548 = vsyncpa [#allocation14], 1
    %s2549 = scalar_lea.sflag [#allocation14], 1
    %2550 = vsyncpa %s2549, 1
    %2551 = vsyncpa [#allocation6], 1
    %s2552 = scalar_lea.sflag [#allocation6], 1
    %2553 = vsyncpa %s2552, 1

</llo_original>
